<compile_context>
chip_gen: v7x
topology: tpu7x:2x2x1
jax: 0.10.0
libtpu: 0.0.40
codegen_flags: <defaults>
</compile_context>

<pallas_src>
import functools

import jax
import jax.numpy as jnp
from jax import lax
from jax.experimental import pallas as pl
from jax.experimental.pallas import tpu as pltpu


# ----------------------------------------------------------------------------
# Kernel
# ----------------------------------------------------------------------------
def _make_pam_kernel(tk, n_valid):
    """n_valid: actual N when padding is present, else None (no masking)."""
    mask_needed = n_valid is not None

    def kernel(q_ref, k_ref, v_ref, xres_ref, gamma_ref, o_ref,
               m_s, l_s, acc_s):
        ki = pl.program_id(2)
        n_kv = pl.num_programs(2)

        @pl.when(ki == 0)
        def _init():
            m_s[...] = jnp.full_like(m_s, -jnp.inf)
            l_s[...] = jnp.zeros_like(l_s)
            acc_s[...] = jnp.zeros_like(acc_s)

        q = q_ref[0]                                   # (tq, C8) bf16
        k = k_ref[0]                                   # (C8, tk) bf16
        v = v_ref[0]                                   # (tk, C)  bf16

        # energy tile: canonical (tq, C8) @ (C8, tk), f32 accumulation
        s = jnp.dot(q, k, preferred_element_type=jnp.float32)   # (tq, tk)

        if mask_needed:
            # mask padded key columns (padding only exists in the last tile,
            # and every tile keeps >= 1 valid column -> no all -inf rows)
            col = ki * tk + lax.broadcasted_iota(jnp.int32, (1, tk), 1)
            s = jnp.where(col < n_valid, s, -jnp.inf)

        # online softmax (unnormalized; normalize once in finalize)
        m_prev = m_s[...]
        m_new = jnp.maximum(m_prev, jnp.max(s, axis=-1, keepdims=True))
        alpha = jnp.exp(m_prev - m_new)                # (tq, 1)
        p = jnp.exp(s - m_new)                         # (tq, tk)

        l_s[...] = alpha * l_s[...] + jnp.sum(p, axis=-1, keepdims=True)
        # canonical (tq, tk) @ (tk, C), f32 accumulation
        acc_s[...] = alpha * acc_s[...] + jnp.dot(
            p.astype(jnp.bfloat16), v, preferred_element_type=jnp.float32)
        m_s[...] = m_new

        @pl.when(ki == n_kv - 1)
        def _finalize():
            inv_l = pl.reciprocal(l_s[...], approx=False)    # exact, once/q-tile
            attn = acc_s[...] * inv_l                        # (tq, C)
            gamma = gamma_ref[0]
            # one XLU transpose per q tile -> lane-dense (C, tq) store
            o_ref[0] = (gamma * attn.T + xres_ref[0]).astype(o_ref.dtype)

    return kernel


# ----------------------------------------------------------------------------
# Tiling / VMEM sizing helpers
# ----------------------------------------------------------------------------
def _rup(x, m):
    return ((x + m - 1) // m) * m


def _vmem_estimate_bytes(C, C8, tq, tk, out_bytes):
    """Double-buffer-aware footprint estimate (includes (8,128) lane padding)."""
    bf16, f32 = 2, 4
    dbl = 2  # Pallas double-buffers every pipelined input/output block
    tiles = dbl * (
        tq * _rup(C8, 128) * bf16          # q^T tile  (1, tq, C8)
        + _rup(C8, 16) * tk * bf16         # k tile    (1, C8, tk)
        + tk * _rup(C, 128) * bf16         # v^T tile  (1, tk, C)
        + C * tq * f32                     # residual x tile (1, C, tq)
        + C * tq * out_bytes)              # output tile     (1, C, tq)
    scratch = tq * _rup(C, 128) * f32 + 2 * tq * 128 * f32      # acc, m, l
    working = tq * tk * (f32 + bf16) + tq * _rup(C, 128) * f32  # s, p, transpose
    return tiles + scratch + working


def _vmem_budget_bytes():
    cap = None
    try:
        cap = int(pltpu.get_tpu_info().vmem_capacity_bytes)
    except Exception:
        cap = None
    if not cap:
        cap = 64 * 1024 * 1024   # conservative: v7x per-TensorCore VMEM
    return int(0.70 * cap)


def _choose_tiles(n_pad, B, C, C8, out_bytes, budget):
    cands = [t for t in (1024, 512, 256, 128) if t <= n_pad and n_pad % t == 0]
    if not cands:
        cands = [n_pad]
    tq, tk = cands[-1], cands[-1]
    done = False
    for tq_c in cands:            # prefer big q tiles (fewer kv re-streams)
        for tk_c in cands:
            if _vmem_estimate_bytes(C, C8, tq_c, tk_c, out_bytes) <= budget:
                tq, tk = tq_c, tk_c
                done = True
                break
        if done:
            break
    # v7x has 2 TensorCores: keep >= 2 parallel grid blocks when possible.
    while B * (n_pad // tq) < 2:
        smaller = [t for t in cands if t < tq]
        if not smaller:
            break
        tq = smaller[0]
    return tq, tk


# ----------------------------------------------------------------------------
# Wrapper
# ----------------------------------------------------------------------------
def pam_forward(x, wq, bq, wk, bk, wv, bv, gamma, *, tq=None, tk=None):
    """x: (B, C, H, W) float32. Returns (B, C, H, W, 1), matching PyTorch."""
    B, C, H, W = x.shape
    C8 = wq.shape[0]
    N = H * W
    N_pad = _rup(N, 128)

    x_flat = x.reshape(B, C, N).astype(jnp.float32)
    if N_pad != N:
        x_pad = jnp.pad(x_flat, ((0, 0), (0, 0), (0, N_pad - N)))
    else:
        x_pad = x_flat

    # Pre-project q / k / v once in the wrapper; bf16 operands for the kernel.
    #   q^T: (B, N_pad, C8)   k: (B, C8, N_pad)   v^T: (B, N_pad, C)
    q_t = (jnp.einsum('oc,bcn->bno', wq, x_pad)
           + bq[None, None, :]).astype(jnp.bfloat16)
    k_p = (jnp.einsum('oc,bcn->bon', wk, x_pad)
           + bk[None, :, None]).astype(jnp.bfloat16)
    v_t = (jnp.einsum('oc,bcn->bno', wv, x_pad)
           + bv[None, None, :]).astype(jnp.bfloat16)
    gamma1 = jnp.asarray(gamma, jnp.float32).reshape(1)

    out_bytes = jnp.dtype(x.dtype).itemsize
    budget = _vmem_budget_bytes()
    if tq is None or tk is None:
        tq_auto, tk_auto = _choose_tiles(N_pad, B, C, C8, out_bytes, budget)
        tq = tq_auto if tq is None else tq
        tk = tk_auto if tk is None else tk
    assert N_pad % tq == 0 and tq % 128 == 0, (N_pad, tq)
    assert N_pad % tk == 0 and tk % 128 == 0, (N_pad, tk)

    grid = (B, N_pad // tq, N_pad // tk)
    kernel = _make_pam_kernel(tk, None if N_pad == N else N)

    out_flat = pl.pallas_call(
        kernel,
        out_shape=jax.ShapeDtypeStruct((B, C, N_pad), x.dtype),
        grid_spec=pltpu.PrefetchScalarGridSpec(
            num_scalar_prefetch=0,
            grid=grid,
            in_specs=[
                pl.BlockSpec((1, tq, C8), lambda b, qi, ki: (b, qi, 0)),  # q^T
                pl.BlockSpec((1, C8, tk), lambda b, qi, ki: (b, 0, ki)),  # k
                pl.BlockSpec((1, tk, C), lambda b, qi, ki: (b, ki, 0)),   # v^T
                pl.BlockSpec((1, C, tq), lambda b, qi, ki: (b, 0, qi)),   # x resid
                pl.BlockSpec(memory_space=pltpu.SMEM),                    # gamma
            ],
            out_specs=pl.BlockSpec((1, C, tq), lambda b, qi, ki: (b, 0, qi)),
            scratch_shapes=[
                pltpu.VMEM((tq, 1), jnp.float32),   # running max
                pltpu.VMEM((tq, 1), jnp.float32),   # running sum
                pltpu.VMEM((tq, C), jnp.float32),   # output accumulator
            ],
        ),
        compiler_params=pltpu.CompilerParams(
            dimension_semantics=("parallel", "parallel", "arbitrary"),
            vmem_limit_bytes=int(budget),
        ),
    )(q_t, k_p, v_t, x_pad, gamma1)

    out = out_flat[:, :, :N].reshape(B, C, H, W)[..., None]
    return out


# ----------------------------------------------------------------------------
# Pure-JAX reference (mirrors the PyTorch forward)
# ----------------------------------------------------------------------------
def pam_reference(x, wq, bq, wk, bk, wv, bv, gamma):
    B, C, H, W = x.shape
    N = H * W
    xf = x.reshape(B, C, N)
    q = jnp.einsum('oc,bcn->bon', wq, xf) + bq[None, :, None]
    k = jnp.einsum('oc,bcn->bon', wk, xf) + bk[None, :, None]
    v = jnp.einsum('oc,bcn->bon', wv, xf) + bv[None, :, None]
    energy = jnp.einsum('bcn,bcm->bnm', q, k)
    att = jax.nn.softmax(energy, axis=-1)
    out = jnp.einsum('bcm,bnm->bcn', v, att)
    out = gamma * out + xf
    return out.reshape(B, C, H, W)[..., None]


if __name__ == "__main__":
    key = jax.random.PRNGKey(0)
    B, C, H, W = 2, 16, 16, 16       # in_dim = 16 -> C//8 = 2, N = 256
    C8 = C // 8

    k_x, k_wq, k_bq, k_wk, k_bk, k_wv, k_bv, k_x2 = jax.random.split(key, 8)
    x = jax.random.normal(k_x, (B, C, H, W), jnp.float32)

    # Conv2d(kernel_size=1) weights == (out_ch, in_ch) matrices + biases.
    wq = jax.random.normal(k_wq, (C8, C), jnp.float32) * 0.1
    bq = jax.random.normal(k_bq, (C8,), jnp.float32) * 0.1
    wk = jax.random.normal(k_wk, (C8, C), jnp.float32) * 0.1
    bk = jax.random.normal(k_bk, (C8,), jnp.float32) * 0.1
    wv = jax.random.normal(k_wv, (C, C), jnp.float32) * 0.1
    bv = jax.random.normal(k_bv, (C,), jnp.float32) * 0.1
    # PyTorch inits gamma to 0; nonzero here exercises the attention path.
    gamma = jnp.float32(0.5)

    ref = pam_reference(x, wq, bq, wk, bk, wv, bv, gamma)

    # Tiled path: 2 q tiles x 2 kv tiles -> exercises the online softmax.
    out_tiled = jax.block_until_ready(
        pam_forward(x, wq, bq, wk, bk, wv, bv, gamma, tq=128, tk=128))
    # Auto tile selection (single kv tile at this toy size).
    out_default = jax.block_until_ready(
        pam_forward(x, wq, bq, wk, bk, wv, bv, gamma))

    assert out_tiled.shape == (B, C, H, W, 1)
    assert out_default.shape == (B, C, H, W, 1)
    # bf16 MXU operands -> loosened tolerance (review OK'd).
    assert jnp.allclose(out_tiled, ref, atol=2e-2, rtol=2e-2), \
        float(jnp.max(jnp.abs(out_tiled - ref)))
    assert jnp.allclose(out_default, ref, atol=2e-2, rtol=2e-2), \
        float(jnp.max(jnp.abs(out_default - ref)))

    # Non-128-multiple spatial size -> exercises the padding / -inf masking.
    H2, W2 = 10, 10                  # N = 100, padded to 128
    x2 = jax.random.normal(k_x2, (B, C, H2, W2), jnp.float32)
    ref2 = pam_reference(x2, wq, bq, wk, bk, wv, bv, gamma)
    out_pad = jax.block_until_ready(
        pam_forward(x2, wq, bq, wk, bk, wv, bv, gamma))
    assert out_pad.shape == (B, C, H2, W2, 1)
    assert jnp.allclose(out_pad, ref2, atol=2e-2, rtol=2e-2), \
        float(jnp.max(jnp.abs(out_pad - ref2)))

    print("KERNEL_OK")
</pallas_src>

<mosaic_0001>
module attributes {stable_mosaic.version = 11 : i64} {
  func.func @kernel(%arg0: i32, %arg1: i32, %arg2: i32, %arg3: memref<1x128x2xbf16, #tpu.memory_space<vmem>>, %arg4: memref<1x2x128xbf16, #tpu.memory_space<vmem>>, %arg5: memref<1x128x16xbf16, #tpu.memory_space<vmem>>, %arg6: memref<1x16x128xf32, #tpu.memory_space<vmem>>, %arg7: memref<1xf32, #tpu.memory_space<smem>>, %arg8: memref<1x16x128xf32, #tpu.memory_space<vmem>>, %arg9: memref<128x1xf32, #tpu.memory_space<vmem>>, %arg10: memref<128x1xf32, #tpu.memory_space<vmem>>, %arg11: memref<128x16xf32, #tpu.memory_space<vmem>>) attributes {dimension_semantics = [#tpu.dimension_semantics<parallel>, #tpu.dimension_semantics<parallel>, #tpu.dimension_semantics<arbitrary>], iteration_bounds = array<i64: 2, 2, 2>, scalar_prefetch = 0 : i64, scratch_operands = 3 : i64, tpu.core_type = #tpu.core_type<tc>, window_params = [{transform_indices = @transform_0, window_bounds = array<i64: 1, 128, 2>}, {transform_indices = @transform_1, window_bounds = array<i64: 1, 2, 128>}, {transform_indices = @transform_2, window_bounds = array<i64: 1, 128, 16>}, {transform_indices = @transform_3, window_bounds = array<i64: 1, 16, 128>}, {transform_indices = @transform_4, window_bounds = array<i64: 1>}, {transform_indices = @transform_5, window_bounds = array<i64: 1, 16, 128>}]} {
    %c0_i32 = arith.constant 0 : i32
    %0 = arith.cmpi eq, %arg2, %c0_i32 : i32
    %1 = arith.extui %0 : i1 to i32
    %c0_i32_0 = arith.constant 0 : i32
    %2 = arith.cmpi ne, %1, %c0_i32_0 : i32
    scf.if %2 {
      %cst_25 = arith.constant 0xFF800000 : f32
      %36 = vector.broadcast %cst_25 : f32 to vector<128x1xf32>
      %c0_26 = arith.constant 0 : index
      %c0_27 = arith.constant 0 : index
      %37 = vector.load %arg9[%c0_26, %c0_27] : memref<128x1xf32, #tpu.memory_space<vmem>>, vector<128x1xf32>
      tpu.vector_store %arg9[%c0_26, %c0_27], %36 {strides = array<i32>} : memref<128x1xf32, #tpu.memory_space<vmem>>, vector<128x1xf32>,
      %cst_28 = arith.constant 0.000000e+00 : f32
      %38 = vector.broadcast %cst_28 : f32 to vector<128x1xf32>
      %c0_29 = arith.constant 0 : index
      %c0_30 = arith.constant 0 : index
      %39 = vector.load %arg10[%c0_29, %c0_30] : memref<128x1xf32, #tpu.memory_space<vmem>>, vector<128x1xf32>
      tpu.vector_store %arg10[%c0_29, %c0_30], %38 {strides = array<i32>} : memref<128x1xf32, #tpu.memory_space<vmem>>, vector<128x1xf32>,
      %cst_31 = arith.constant 0.000000e+00 : f32
      %40 = vector.broadcast %cst_31 : f32 to vector<128x16xf32>
      %c0_32 = arith.constant 0 : index
      %c0_33 = arith.constant 0 : index
      %41 = vector.load %arg11[%c0_32, %c0_33] : memref<128x16xf32, #tpu.memory_space<vmem>>, vector<128x16xf32>
      tpu.vector_store %arg11[%c0_32, %c0_33], %40 {strides = array<i32>} : memref<128x16xf32, #tpu.memory_space<vmem>>, vector<128x16xf32>,
    } else {
    }
    %c0 = arith.constant 0 : index
    %c0_1 = arith.constant 0 : index
    %c0_2 = arith.constant 0 : index
    %3 = vector.load %arg3[%c0, %c0_1, %c0_2] : memref<1x128x2xbf16, #tpu.memory_space<vmem>>, vector<1x128x2xbf16>
    %4 = vector.shape_cast %3 : vector<1x128x2xbf16> to vector<128x2xbf16>
    %c0_3 = arith.constant 0 : index
    %c0_4 = arith.constant 0 : index
    %c0_5 = arith.constant 0 : index
    %5 = vector.load %arg4[%c0_3, %c0_4, %c0_5] : memref<1x2x128xbf16, #tpu.memory_space<vmem>>, vector<1x2x128xbf16>
    %6 = vector.shape_cast %5 : vector<1x2x128xbf16> to vector<2x128xbf16>
    %c0_6 = arith.constant 0 : index
    %c0_7 = arith.constant 0 : index
    %c0_8 = arith.constant 0 : index
    %7 = vector.load %arg5[%c0_6, %c0_7, %c0_8] : memref<1x128x16xbf16, #tpu.memory_space<vmem>>, vector<1x128x16xbf16>
    %8 = vector.shape_cast %7 : vector<1x128x16xbf16> to vector<128x16xbf16>
    %cst = arith.constant dense<0.000000e+00> : vector<128x128xf32>
    %9 = tpu.matmul %4, %6, %cst {dimension_numbers = #tpu.dot_dimension_numbers<[1], [0], [0], [1], [0, 0, 1, 1], [], []>} : vector<128x2xbf16>, vector<2x128xbf16>, vector<128x128xf32> -> vector<128x128xf32>
    %c0_9 = arith.constant 0 : index
    %c0_10 = arith.constant 0 : index
    %10 = vector.load %arg9[%c0_9, %c0_10] : memref<128x1xf32, #tpu.memory_space<vmem>>, vector<128x1xf32>
    %cst_11 = arith.constant dense<0xFF800000> : vector<128xf32>
    %11 = vector.multi_reduction <maximumf>, %9, %cst_11 [1] : vector<128x128xf32> to vector<128xf32>
    %12 = vector.shape_cast %11 : vector<128xf32> to vector<128x1xf32>
    %13 = arith.maximumf %10, %12 : vector<128x1xf32>
    %14 = arith.subf %10, %13 : vector<128x1xf32>
    %15 = math.exp %14 : vector<128x1xf32>
    %16 = vector.broadcast %13 : vector<128x1xf32> to vector<128x128xf32>
    %17 = arith.subf %9, %16 : vector<128x128xf32>
    %18 = math.exp %17 : vector<128x128xf32>
    %c0_12 = arith.constant 0 : index
    %c0_13 = arith.constant 0 : index
    %19 = vector.load %arg10[%c0_12, %c0_13] : memref<128x1xf32, #tpu.memory_space<vmem>>, vector<128x1xf32>
    %20 = arith.mulf %15, %19 : vector<128x1xf32>
    %cst_14 = arith.constant dense<0.000000e+00> : vector<128xf32>
    %21 = vector.multi_reduction <add>, %18, %cst_14 [1] : vector<128x128xf32> to vector<128xf32>
    %22 = vector.shape_cast %21 : vector<128xf32> to vector<128x1xf32>
    %23 = arith.addf %20, %22 : vector<128x1xf32>
    %c0_15 = arith.constant 0 : index
    %c0_16 = arith.constant 0 : index
    %24 = vector.load %arg10[%c0_15, %c0_16] : memref<128x1xf32, #tpu.memory_space<vmem>>, vector<128x1xf32>
    tpu.vector_store %arg10[%c0_15, %c0_16], %23 {strides = array<i32>} : memref<128x1xf32, #tpu.memory_space<vmem>>, vector<128x1xf32>,
    %c0_17 = arith.constant 0 : index
    %c0_18 = arith.constant 0 : index
    %25 = vector.load %arg11[%c0_17, %c0_18] : memref<128x16xf32, #tpu.memory_space<vmem>>, vector<128x16xf32>
    %26 = vector.broadcast %15 : vector<128x1xf32> to vector<128x16xf32>
    %27 = arith.mulf %26, %25 : vector<128x16xf32>
    %28 = arith.truncf %18 : vector<128x128xf32> to vector<128x128xbf16>
    %cst_19 = arith.constant dense<0.000000e+00> : vector<128x16xf32>
    %29 = tpu.matmul %28, %8, %cst_19 {dimension_numbers = #tpu.dot_dimension_numbers<[1], [0], [0], [1], [0, 0, 1, 1], [], []>} : vector<128x128xbf16>, vector<128x16xbf16>, vector<128x16xf32> -> vector<128x16xf32>
    %30 = arith.addf %27, %29 : vector<128x16xf32>
    %c0_20 = arith.constant 0 : index
    %c0_21 = arith.constant 0 : index
    %31 = vector.load %arg11[%c0_20, %c0_21] : memref<128x16xf32, #tpu.memory_space<vmem>>, vector<128x16xf32>
    tpu.vector_store %arg11[%c0_20, %c0_21], %30 {strides = array<i32>} : memref<128x16xf32, #tpu.memory_space<vmem>>, vector<128x16xf32>,
    %c0_22 = arith.constant 0 : index
    %c0_23 = arith.constant 0 : index
    %32 = vector.load %arg9[%c0_22, %c0_23] : memref<128x1xf32, #tpu.memory_space<vmem>>, vector<128x1xf32>
    tpu.vector_store %arg9[%c0_22, %c0_23], %13 {strides = array<i32>} : memref<128x1xf32, #tpu.memory_space<vmem>>, vector<128x1xf32>,
    %c1_i32 = arith.constant 1 : i32
    %33 = arith.cmpi eq, %arg2, %c1_i32 : i32
    %34 = arith.extui %33 : i1 to i32
    %c0_i32_24 = arith.constant 0 : i32
    %35 = arith.cmpi ne, %34, %c0_i32_24 : i32
    scf.if %35 {
      %c0_25 = arith.constant 0 : index
      %c0_26 = arith.constant 0 : index
      %36 = vector.load %arg10[%c0_25, %c0_26] : memref<128x1xf32, #tpu.memory_space<vmem>>, vector<128x1xf32>
      %37 = tpu.reciprocal %36 : vector<128x1xf32> -> vector<128x1xf32>
      %c0_27 = arith.constant 0 : index
      %c0_28 = arith.constant 0 : index
      %38 = vector.load %arg11[%c0_27, %c0_28] : memref<128x16xf32, #tpu.memory_space<vmem>>, vector<128x16xf32>
      %39 = vector.broadcast %37 : vector<128x1xf32> to vector<128x16xf32>
      %40 = arith.mulf %38, %39 : vector<128x16xf32>
      %c0_29 = arith.constant 0 : index
      %41 = memref.load %arg7[%c0_29] : memref<1xf32, #tpu.memory_space<smem>>
      %42 = tpu.transpose %40, [1, 0] : vector<128x16xf32> -> vector<16x128xf32>
      %43 = vector.broadcast %41 : f32 to vector<16x128xf32>
      %44 = arith.mulf %43, %42 : vector<16x128xf32>
      %c0_30 = arith.constant 0 : index
      %c0_31 = arith.constant 0 : index
      %c0_32 = arith.constant 0 : index
      %45 = vector.load %arg6[%c0_30, %c0_31, %c0_32] : memref<1x16x128xf32, #tpu.memory_space<vmem>>, vector<1x16x128xf32>
      %46 = vector.shape_cast %45 : vector<1x16x128xf32> to vector<16x128xf32>
      %47 = arith.addf %44, %46 : vector<16x128xf32>
      %c0_33 = arith.constant 0 : index
      %c0_34 = arith.constant 0 : index
      %c0_35 = arith.constant 0 : index
      %48 = vector.load %arg8[%c0_33, %c0_34, %c0_35] : memref<1x16x128xf32, #tpu.memory_space<vmem>>, vector<1x16x128xf32>
      %49 = vector.shape_cast %48 : vector<1x16x128xf32> to vector<16x128xf32>
      %50 = vector.shape_cast %47 : vector<16x128xf32> to vector<1x16x128xf32>
      tpu.vector_store %arg8[%c0_33, %c0_34, %c0_35], %50 {strides = array<i32>} : memref<1x16x128xf32, #tpu.memory_space<vmem>>, vector<1x16x128xf32>,
    } else {
    }
    return
  }
  func.func @transform_0(%arg0: i32, %arg1: i32, %arg2: i32) -> (i32, i32, i32) {
    %c0_i32 = arith.constant 0 : i32
    %c0_i32_0 = arith.constant 0 : i32
    return %arg0, %arg1, %c0_i32 : i32, i32, i32
  }
  func.func @transform_1(%arg0: i32, %arg1: i32, %arg2: i32) -> (i32, i32, i32) {
    %c0_i32 = arith.constant 0 : i32
    %c0_i32_0 = arith.constant 0 : i32
    return %arg0, %c0_i32, %arg2 : i32, i32, i32
  }
  func.func @transform_2(%arg0: i32, %arg1: i32, %arg2: i32) -> (i32, i32, i32) {
    %c0_i32 = arith.constant 0 : i32
    %c0_i32_0 = arith.constant 0 : i32
    return %arg0, %arg2, %c0_i32 : i32, i32, i32
  }
  func.func @transform_3(%arg0: i32, %arg1: i32, %arg2: i32) -> (i32, i32, i32) {
    %c0_i32 = arith.constant 0 : i32
    %c0_i32_0 = arith.constant 0 : i32
    return %arg0, %c0_i32, %arg1 : i32, i32, i32
  }
  func.func @transform_4(%arg0: i32, %arg1: i32, %arg2: i32) -> i32 {
    %c0_i32 = arith.constant 0 : i32
    %c0_i32_0 = arith.constant 0 : i32
    return %c0_i32 : i32
  }
  func.func @transform_5(%arg0: i32, %arg1: i32, %arg2: i32) -> (i32, i32, i32) {
    %c0_i32 = arith.constant 0 : i32
    %c0_i32_0 = arith.constant 0 : i32
    return %arg0, %c0_i32, %arg1 : i32, i32, i32
  }
}

</mosaic_0001>

<llo_original>
// kernel: tpu_custom_call.1
$region0: #{tpu_custom_call.1}
  #allocation0 [shape = 'u32[]', space=smem, size = 0x4, offset = 0x4, fixed_abs, tag = 'smem constant byte address 0x4 - core index']
  #allocation1 [shape = 'u32[144,128]{1,0:T(1,128)}', space=vmem, size = 0x12000, scoped, tag = 'internal scratch']
  #allocation2 [shape = 'f32[128,1]{1,0:T(8,128)}', space=vmem, size = 0x10000, scoped, tag = 'scratch operand']
  #allocation3 [shape = 'f32[128,1]{1,0:T(8,128)}', space=vmem, size = 0x10000, scoped, tag = 'scratch operand']
  #allocation4 [shape = 'f32[128,16]{1,0:T(8,128)}', space=vmem, size = 0x10000, scoped, tag = 'scratch operand']
  #allocation5 [shape = 'f32[1]{0:T(128)S(6)}', space=smem, size = 0x200, scoped, tag = 'scoped memory for tpu_custom_call.1']
  %s0 = inlined_call_operand.vmem [shape: bf16[2,256,2], index: 0, kind: input, shape index: {}]
  %s1 = inlined_call_operand.vmem [shape: bf16[2,2,256], index: 1, kind: input, shape index: {}]
  %s2 = inlined_call_operand.vmem [shape: bf16[2,256,16], index: 2, kind: input, shape index: {}]
  %s3 = inlined_call_operand.vmem [shape: f32[2,16,256], index: 3, kind: input, shape index: {}]
  %s4 = inlined_call_operand.<no memory space> [shape: f32[1], index: 4, kind: input, shape index: {}]
  %s5 = inlined_call_operand.hbm [shape: f32[2,16,256], index: 5, kind: output, shape index: {}]
  %s6 = sld [smem:[#allocation0]]
  $region99: #{tpu_custom_call.1} parent=0
    _
  %s8 = ssub.s32 1, %s6
  %s9 = scalar_select 0, %s8, %s6
  %10 = sst [smem:[#allocation5]] %s4
  $region1: #{tpu_custom_call.1} parent=0
    #allocation6 [shape = 'u8[16384]{0}', space=vmem, size = 0x4000, scoped, tag = 'input window, operand 3']
    #allocation7 [shape = 'u8[16384]{0}', space=vmem, size = 0x4000, scoped, tag = 'output window, operand 0']
    #allocation8 [shape = 's32[2]{0}', space=sflag, size = 0x8, scoped, tag = 'scoped memory for tpu_custom_call.1']
    %11 = vsyncpa [#allocation8], 0
    %s12 = scalar_lea.sflag [#allocation8], 1
    %13 = vsyncpa %s12, 0
    loop: start=0, step=1, limit=10
    $region2: #{tpu_custom_call.1} parent=1 // loop_pre_header
      _
    $region3: #{tpu_custom_call.1} parent=1 // loop_header
      %s15 = sphi 0, %s19
      %p16 = scmp.ge.s32.totalorder %s15, 10
      %s22 = sphi 0, %s41
      %s23 = sphi 0, %s37
      %s24 = sphi 0, %s33
      %s25 = sphi 0, %s22
      %s26 = sphi 0, %s23
      %s27 = sphi 0, %s24
      %s28 = sphi 0, %s25
      %s29 = sphi 0, %s26
      %s30 = sphi 0, %s27
      %s46 = sphi 0, %s48
      %s49 = sphi 0, %s46
      %s50 = sphi 0, %s49
      %s66 = sphi 0, %s50
      %s74 = sphi 0, %s76
      %s77 = sphi 0, %s74
      %s78 = sphi 0, %s77
      %s94 = sphi 0, %s78
      %s102 = sphi 0, %s104
      %s105 = sphi 0, %s102
      %s106 = sphi 0, %s105
      %s122 = sphi 0, %s106
      %s130 = sphi 0, %s132
      %s133 = sphi 0, %s130
      %s134 = sphi 0, %s133
      %s150 = sphi 0, %s134
      %s154 = sphi 0, %s154
      %s156 = sphi 0, %s154
      %s157 = sphi 0, %s156
      %s171 = sphi 0, %s157
      %s179 = sphi 0, %s181
      %s182 = sphi 0, %s179
      %s183 = sphi 0, %s182
      %s199 = sphi 0, %s183
    $region4: #{tpu_custom_call.1} parent=1 // loop_header_branch
      %18 = sbr.rel (%p16) target = $region8
    $region5: #{tpu_custom_call.1} parent=1 // loop_body
      %s20 = ssub.s32 %s15, 1
      %s21 = ssub.s32 %s15, 2
      %s31 = sadd.s32 1, %s24
      %p32 = scmp.ge.s32.totalorder %s31, 2
      %s33 = scalar_select %p32, 0, %s31
      %s34 = sadd.s32 1, %s23
      %s35 = scalar_select %p32, %s34, %s23
      %p36 = scmp.ge.s32.totalorder %s35, 2
      %s37 = scalar_select %p36, 0, %s35
      %s38 = sadd.s32 1, %s22
      %s39 = scalar_select %p36, %s38, %s22
      %p40 = scmp.ge.s32.totalorder %s39, 2
      %s41 = scalar_select %p40, 0, %s39
      %s42 = ssub.s32 %s22, %s41
      %s43 = ssub.s32 %s23, %s37
      %s44 = sor.u32 %s42, %s43
      %p45 = scmp.eq.s32.totalorder %s44, 0
      %s47 = sadd.s32 %s46, 1
      %s48 = scalar_select %p45, %s46, %s47
      %p51 = pneg %p45
      %p52 = scmp.eq.s32.totalorder %s15, 7
      %p53 = por %p51, %p52
      %p54 = scmp.ne.s32.totalorder %s46, %s49
      %p55 = scmp.eq.s32.totalorder %s15, 0
      %p56 = por %p54, %p55
      %p57 = scmp.ne.s32.totalorder %s46, %s49
      %p58 = scmp.eq.s32.totalorder %s20, 7
      %p59 = por %p57, %p58
      %p60 = scmp.ne.s32.totalorder %s49, %s50
      %p61 = scmp.eq.s32.totalorder %s20, 0
      %p62 = por %p60, %p61
      %p63 = scmp.ne.s32.totalorder %s49, %s50
      %p64 = scmp.eq.s32.totalorder %s21, 7
      %p65 = por %p63, %p64
      %p67 = scmp.ne.s32.totalorder %s50, %s66
      %p68 = scmp.eq.s32.totalorder %s21, 0
      %p69 = por %p67, %p68
      %s70 = ssub.s32 %s22, %s41
      %s71 = ssub.s32 %s24, %s33
      %s72 = sor.u32 %s70, %s71
      %p73 = scmp.eq.s32.totalorder %s72, 0
      %s75 = sadd.s32 %s74, 1
      %s76 = scalar_select %p73, %s74, %s75
      %p79 = pneg %p73
      %p80 = scmp.eq.s32.totalorder %s15, 7
      %p81 = por %p79, %p80
      %p82 = scmp.ne.s32.totalorder %s74, %s77
      %p83 = scmp.eq.s32.totalorder %s15, 0
      %p84 = por %p82, %p83
      %p85 = scmp.ne.s32.totalorder %s74, %s77
      %p86 = scmp.eq.s32.totalorder %s20, 7
      %p87 = por %p85, %p86
      %p88 = scmp.ne.s32.totalorder %s77, %s78
      %p89 = scmp.eq.s32.totalorder %s20, 0
      %p90 = por %p88, %p89
      %p91 = scmp.ne.s32.totalorder %s77, %s78
      %p92 = scmp.eq.s32.totalorder %s21, 7
      %p93 = por %p91, %p92
      %p95 = scmp.ne.s32.totalorder %s78, %s94
      %p96 = scmp.eq.s32.totalorder %s21, 0
      %p97 = por %p95, %p96
      %s98 = ssub.s32 %s22, %s41
      %s99 = ssub.s32 %s24, %s33
      %s100 = sor.u32 %s98, %s99
      %p101 = scmp.eq.s32.totalorder %s100, 0
      %s103 = sadd.s32 %s102, 1
      %s104 = scalar_select %p101, %s102, %s103
      %p107 = pneg %p101
      %p108 = scmp.eq.s32.totalorder %s15, 7
      %p109 = por %p107, %p108
      %p110 = scmp.ne.s32.totalorder %s102, %s105
      %p111 = scmp.eq.s32.totalorder %s15, 0
      %p112 = por %p110, %p111
      %p113 = scmp.ne.s32.totalorder %s102, %s105
      %p114 = scmp.eq.s32.totalorder %s20, 7
      %p115 = por %p113, %p114
      %p116 = scmp.ne.s32.totalorder %s105, %s106
      %p117 = scmp.eq.s32.totalorder %s20, 0
      %p118 = por %p116, %p117
      %p119 = scmp.ne.s32.totalorder %s105, %s106
      %p120 = scmp.eq.s32.totalorder %s21, 7
      %p121 = por %p119, %p120
      %p123 = scmp.ne.s32.totalorder %s106, %s122
      %p124 = scmp.eq.s32.totalorder %s21, 0
      %p125 = por %p123, %p124
      %s126 = ssub.s32 %s22, %s41
      %s127 = ssub.s32 %s23, %s37
      %s128 = sor.u32 %s126, %s127
      %p129 = scmp.eq.s32.totalorder %s128, 0
      %s131 = sadd.s32 %s130, 1
      %s132 = scalar_select %p129, %s130, %s131
      %p135 = pneg %p129
      %p136 = scmp.eq.s32.totalorder %s15, 7
      %p137 = por %p135, %p136
      %p138 = scmp.ne.s32.totalorder %s130, %s133
      %p139 = scmp.eq.s32.totalorder %s15, 0
      %p140 = por %p138, %p139
      %p141 = scmp.ne.s32.totalorder %s130, %s133
      %p142 = scmp.eq.s32.totalorder %s20, 7
      %p143 = por %p141, %p142
      %p144 = scmp.ne.s32.totalorder %s133, %s134
      %p145 = scmp.eq.s32.totalorder %s20, 0
      %p146 = por %p144, %p145
      %p147 = scmp.ne.s32.totalorder %s133, %s134
      %p148 = scmp.eq.s32.totalorder %s21, 7
      %p149 = por %p147, %p148
      %p151 = scmp.ne.s32.totalorder %s134, %s150
      %p152 = scmp.eq.s32.totalorder %s21, 0
      %p153 = por %p151, %p152
      %s155 = sadd.s32 %s154, 1
      %p158 = scmp.eq.s32.totalorder %s15, 7
      %p159 = scmp.ne.s32.totalorder %s154, %s156
      %p160 = scmp.eq.s32.totalorder %s15, 0
      %p161 = por %p159, %p160
      %p162 = scmp.ne.s32.totalorder %s154, %s156
      %p163 = scmp.eq.s32.totalorder %s20, 7
      %p164 = por %p162, %p163
      %p165 = scmp.ne.s32.totalorder %s156, %s157
      %p166 = scmp.eq.s32.totalorder %s20, 0
      %p167 = por %p165, %p166
      %p168 = scmp.ne.s32.totalorder %s156, %s157
      %p169 = scmp.eq.s32.totalorder %s21, 7
      %p170 = por %p168, %p169
      %p172 = scmp.ne.s32.totalorder %s157, %s171
      %p173 = scmp.eq.s32.totalorder %s21, 0
      %p174 = por %p172, %p173
      %s175 = ssub.s32 %s22, %s41
      %s176 = ssub.s32 %s23, %s37
      %s177 = sor.u32 %s175, %s176
      %p178 = scmp.eq.s32.totalorder %s177, 0
      %s180 = sadd.s32 %s179, 1
      %s181 = scalar_select %p178, %s179, %s180
      %p184 = pneg %p178
      %p185 = scmp.eq.s32.totalorder %s15, 7
      %p186 = por %p184, %p185
      %p187 = scmp.ne.s32.totalorder %s179, %s182
      %p188 = scmp.eq.s32.totalorder %s15, 0
      %p189 = por %p187, %p188
      %p190 = scmp.ne.s32.totalorder %s179, %s182
      %p191 = scmp.eq.s32.totalorder %s20, 7
      %p192 = por %p190, %p191
      %p193 = scmp.ne.s32.totalorder %s182, %s183
      %p194 = scmp.eq.s32.totalorder %s20, 0
      %p195 = por %p193, %p194
      %p196 = scmp.ne.s32.totalorder %s182, %s183
      %p197 = scmp.eq.s32.totalorder %s21, 7
      %p198 = por %p196, %p197
      %p200 = scmp.ne.s32.totalorder %s183, %s199
      %p201 = scmp.eq.s32.totalorder %s21, 0
      %p202 = por %p200, %p201
      %p203 = scmp.le.s32.totalorder 1, %s15
      %p204 = scmp.lt.s32.totalorder %s15, 9
      %p205 = pnand %p203, %p204
      %p206 = pneg %p205
      // Predicated region
      $region9: #{tpu_custom_call.1} parent=5 // pred_check
        _
      $region10: #{tpu_custom_call.1} parent=5 // pred_check_branch
        %208 = sbr.rel (%p205) target = $region12
      $region11: #{tpu_custom_call.1} parent=5 // pred_region
        %s209 = ssub.s32 %s15, 1
        // Predicated region
        $region13: #{tpu_custom_call.1} parent=11 // pred_check
          %p210 = pneg %p167
        $region14: #{tpu_custom_call.1} parent=11 // pred_check_branch
          %212 = sbr.rel (%p210) target = $region16
        $region15: #{tpu_custom_call.1} parent=11 // pred_region
          _
        $region16: #{tpu_custom_call.1} parent=11 // pred_fallthru
          _
      $region12: #{tpu_custom_call.1} parent=5 // pred_fallthru
        _
      %p213 = scmp.lt.s32.totalorder %s15, 8
      // Predicated region
      $region17: #{tpu_custom_call.1} parent=5 // pred_check
        %p214 = pneg %p213
      $region18: #{tpu_custom_call.1} parent=5 // pred_check_branch
        %216 = sbr.rel (%p214) target = $region20
      $region19: #{tpu_custom_call.1} parent=5 // pred_region
        // Predicated region
        $region21: #{tpu_custom_call.1} parent=19 // pred_check
          %p217 = pneg %p56
        $region22: #{tpu_custom_call.1} parent=19 // pred_check_branch
          %219 = sbr.rel (%p217) target = $region24
        $region23: #{tpu_custom_call.1} parent=19 // pred_region
          %s220 = smul.u32 16, %s23
          %p221 = scmp.lt.s32.totalorder %s22, 1
          %s222 = scalar_select %p221, %s22, 1
          %p223 = scmp.lt.s32.totalorder %s220, 31
          %s224 = scalar_select %p223, %s220, 31
          %s225 = smul.addr %s222, 32
          %s226 = sadd.s32 %s224, %s225
          %s227 = smul.addr %s226, 4
          %s228 = scalar_lea.vmem %s0, %s227
          %s229 = smul.u32 16, %s23
        $region24: #{tpu_custom_call.1} parent=19 // pred_fallthru
          _
        // Predicated region
        $region25: #{tpu_custom_call.1} parent=19 // pred_check
          %p230 = pneg %p84
        $region26: #{tpu_custom_call.1} parent=19 // pred_check_branch
          %232 = sbr.rel (%p230) target = $region28
        $region27: #{tpu_custom_call.1} parent=19 // pred_region
          %p233 = scmp.lt.s32.totalorder %s22, 1
          %s234 = scalar_select %p233, %s22, 1
          %p235 = scmp.lt.s32.totalorder %s24, 1
          %s236 = scalar_select %p235, %s24, 1
          %s237 = smul.addr %s234, 2
          %s238 = sadd.s32 %s236, %s237
          %s239 = scalar_lea.vmem %s1, %s238
        $region28: #{tpu_custom_call.1} parent=19 // pred_fallthru
          _
        // Predicated region
        $region29: #{tpu_custom_call.1} parent=19 // pred_check
          %p240 = pneg %p112
        $region30: #{tpu_custom_call.1} parent=19 // pred_check_branch
          %242 = sbr.rel (%p240) target = $region32
        $region31: #{tpu_custom_call.1} parent=19 // pred_region
          %s243 = smul.u32 16, %s24
          %p244 = scmp.lt.s32.totalorder %s22, 1
          %s245 = scalar_select %p244, %s22, 1
          %p246 = scmp.lt.s32.totalorder %s243, 31
          %s247 = scalar_select %p246, %s243, 31
          %s248 = smul.addr %s245, 32
          %s249 = sadd.s32 %s247, %s248
          %s250 = smul.addr %s249, 4
          %s251 = scalar_lea.vmem %s2, %s250
          %s252 = smul.u32 16, %s24
        $region32: #{tpu_custom_call.1} parent=19 // pred_fallthru
          _
        // Predicated region
        $region33: #{tpu_custom_call.1} parent=19 // pred_check
          %p253 = pneg %p140
        $region34: #{tpu_custom_call.1} parent=19 // pred_check_branch
          %255 = sbr.rel (%p253) target = $region36
        $region35: #{tpu_custom_call.1} parent=19 // pred_region
          %s256 = sand.u32 %s130, 1
          %s257 = sand.u32 %s130, 1
          %s258 = smul.addr %s257, 16
          %s259 = scalar_lea.vmem [#allocation6], %s258
          %s260 = smul.addr %s22, 4
          %s261 = sadd.s32 %s23, %s260
          %s262 = smul.addr %s261, 8
          %s263 = scalar_lea.vmem %s3, %s262
          // Predicated region
          $region37: #{tpu_custom_call.1} parent=35 // pred_check
            _
          $region38: #{tpu_custom_call.1} parent=35 // pred_check_branch
            %265 = sbr.rel (0) target = $region40
          $region39: #{tpu_custom_call.1} parent=35 // pred_region
            // Predicated region
            $region41: #{tpu_custom_call.1} parent=39 // pred_check
              _
            $region42: #{tpu_custom_call.1} parent=39 // pred_check_branch
              %267 = sbr.rel (0) target = $region44
            $region43: #{tpu_custom_call.1} parent=39 // pred_region
              // Predicated region
              $region56: #{tpu_custom_call.1} parent=43 // pred_check
                _
              $region57: #{tpu_custom_call.1} parent=43 // pred_check_branch
                %284 = sbr.rel (0) target = $region59
              $region58: #{tpu_custom_call.1} parent=43 // pred_region
                loop: start=0, step=1, limit=1
                $region60: #{tpu_custom_call.1} parent=58 // loop_pre_header
                  _
                $region61: #{tpu_custom_call.1} parent=58 // loop_header
                  %s286 = sphi 0, %s290
                  %p287 = scmp.ge.s32.totalorder %s286, 1
                  %s291 = sphi %s263, %s263
                  %s292 = sphi %s259, %s259
                $region62: #{tpu_custom_call.1} parent=58 // loop_header_branch
                  %289 = sbr.rel (%p287) target = $region66
                $region63: #{tpu_custom_call.1} parent=58 // loop_body
                  %v293 = vld [vmem:[%s291] sm:$0xff]
                  %294 = vst [vmem:[%s292] sm:$0xff] %v293
                  %v295 = vld [vmem:[%s291 + $0x10] sm:$0xff]
                  %296 = vst [vmem:[%s292 + $0x8] sm:$0xff] %v295
                $region64: #{tpu_custom_call.1} parent=58 // loop_footer
                  %s290 = sadd.s32 1, %s286
                $region65: #{tpu_custom_call.1} parent=58 // loop_footer_branch
                  %285 = sbr.rel target = $region61
                $region66: #{tpu_custom_call.1} parent=58 // loop_exit
                  _
              $region59: #{tpu_custom_call.1} parent=43 // pred_fallthru
                _
              // Predicated region
              $region67: #{tpu_custom_call.1} parent=43 // pred_check
                _
              $region68: #{tpu_custom_call.1} parent=43 // pred_check_branch
                %298 = sbr.rel target = $region70
              $region69: #{tpu_custom_call.1} parent=43 // pred_region
                _
              $region70: #{tpu_custom_call.1} parent=43 // pred_fallthru
                _
            $region44: #{tpu_custom_call.1} parent=39 // pred_fallthru
              _
            // Predicated region
            $region45: #{tpu_custom_call.1} parent=39 // pred_check
              _
            $region46: #{tpu_custom_call.1} parent=39 // pred_check_branch
              %269 = sbr.rel target = $region48
            $region47: #{tpu_custom_call.1} parent=39 // pred_region
              loop: start=0, step=1, limit=1
              $region49: #{tpu_custom_call.1} parent=47 // loop_pre_header
                _
              $region50: #{tpu_custom_call.1} parent=47 // loop_header
                %s272 = sphi 0, %s276
                %p273 = scmp.ge.s32.totalorder %s272, 1
                %s277 = sphi %s263, %s263
                %s278 = sphi %s259, %s259
              $region51: #{tpu_custom_call.1} parent=47 // loop_header_branch
                %275 = sbr.rel (%p273) target = $region55
              $region52: #{tpu_custom_call.1} parent=47 // loop_body
                %v279 = vld [vmem:[%s277] sm:$0xff]
                %280 = vst [vmem:[%s278] sm:$0xff] %v279
                %v281 = vld [vmem:[%s277 + $0x10] sm:$0xff]
                %282 = vst [vmem:[%s278 + $0x8] sm:$0xff] %v281
              $region53: #{tpu_custom_call.1} parent=47 // loop_footer
                %s276 = sadd.s32 1, %s272
              $region54: #{tpu_custom_call.1} parent=47 // loop_footer_branch
                %271 = sbr.rel target = $region50
              $region55: #{tpu_custom_call.1} parent=47 // loop_exit
                _
            $region48: #{tpu_custom_call.1} parent=39 // pred_fallthru
              _
          $region40: #{tpu_custom_call.1} parent=35 // pred_fallthru
            _
          %299 = vnop
        $region36: #{tpu_custom_call.1} parent=19 // pred_fallthru
          _
      $region20: #{tpu_custom_call.1} parent=5 // pred_fallthru
        _
      %p300 = scmp.le.s32.totalorder 1, %s15
      %p301 = scmp.lt.s32.totalorder %s15, 9
      %p302 = pnand %p300, %p301
      %p303 = pneg %p302
      // Predicated region
      $region71: #{tpu_custom_call.1} parent=5 // pred_check
        _
      $region72: #{tpu_custom_call.1} parent=5 // pred_check_branch
        %305 = sbr.rel (%p302) target = $region74
      $region73: #{tpu_custom_call.1} parent=5 // pred_region
        %s306 = ssub.s32 %s15, 1
        %s307 = sand.u32 %s133, 1
        %s308 = sand.u32 %s133, 1
        %s309 = smul.addr %s308, 16
        %s310 = scalar_lea.vmem [#allocation6], %s309
        // Predicated region
        $region75: #{tpu_custom_call.1} parent=73 // pred_check
          %p311 = pneg %p146
        $region76: #{tpu_custom_call.1} parent=73 // pred_check_branch
          %313 = sbr.rel (%p311) target = $region78
        $region77: #{tpu_custom_call.1} parent=73 // pred_region
          _
        $region78: #{tpu_custom_call.1} parent=73 // pred_fallthru
          _
        %s314 = smul.u32 16, %s26
        %p315 = scmp.lt.s32.totalorder %s25, 1
        %s316 = scalar_select %p315, %s25, 1
        %p317 = scmp.lt.s32.totalorder %s314, 31
        %s318 = scalar_select %p317, %s314, 31
        %s319 = smul.addr %s316, 32
        %s320 = sadd.s32 %s318, %s319
        %s321 = smul.addr %s320, 4
        %s322 = scalar_lea.vmem %s0, %s321
        %p323 = pneg %p62
        %p324 = pneg %p59
        %p325 = scmp.lt.s32.totalorder %s25, 1
        %s326 = scalar_select %p325, %s25, 1
        %p327 = scmp.lt.s32.totalorder %s27, 1
        %s328 = scalar_select %p327, %s27, 1
        %s329 = smul.addr %s326, 2
        %s330 = sadd.s32 %s328, %s329
        %s331 = scalar_lea.vmem %s1, %s330
        %p332 = pneg %p90
        %p333 = pneg %p87
        %s334 = smul.u32 16, %s27
        %p335 = scmp.lt.s32.totalorder %s25, 1
        %s336 = scalar_select %p335, %s25, 1
        %p337 = scmp.lt.s32.totalorder %s334, 31
        %s338 = scalar_select %p337, %s334, 31
        %s339 = smul.addr %s336, 32
        %s340 = sadd.s32 %s338, %s339
        %s341 = smul.addr %s340, 4
        %s342 = scalar_lea.vmem %s2, %s341
        %p343 = pneg %p118
        %p344 = pneg %p115
        %s345 = sand.u32 %s133, 1
        %s346 = sand.u32 %s133, 1
        %s347 = smul.addr %s346, 16
        %s348 = scalar_lea.vmem [#allocation6], %s347
        %p349 = pneg %p146
        %p350 = pneg %p143
        %p351 = pneg %p167
        %p352 = pneg %p164
        %p353 = pneg %p195
        %p354 = pneg %p192
        %s355 = sand.u32 %s182, 1
        %s356 = scalar_lea.sflag [#allocation8], %s355
        %s357 = sand.u32 %s182, 1
        %s358 = smul.addr %s357, 16
        %s359 = scalar_lea.vmem [#allocation7], %s358
        %s360 = smul.u32 16, %s26
        %p361 = scmp.lt.s32.totalorder %s25, 1
        %s362 = scalar_select %p361, %s25, 1
        %p363 = scmp.lt.s32.totalorder %s360, 31
        %s364 = scalar_select %p363, %s360, 31
        %s365 = smul.addr %s362, 32
        %s366 = sadd.s32 %s364, %s365
        %s367 = smul.addr %s366, 4
        %s368 = scalar_lea.vmem %s0, %s367
        %s369 = smul.u32 16, %s26
        %p370 = scmp.lt.s32.totalorder %s25, 1
        %s371 = scalar_select %p370, %s25, 1
        %p372 = scmp.lt.s32.totalorder %s27, 1
        %s373 = scalar_select %p372, %s27, 1
        %s374 = smul.addr %s371, 2
        %s375 = sadd.s32 %s373, %s374
        %s376 = scalar_lea.vmem %s1, %s375
        %s377 = smul.u32 16, %s27
        %p378 = scmp.lt.s32.totalorder %s25, 1
        %s379 = scalar_select %p378, %s25, 1
        %p380 = scmp.lt.s32.totalorder %s377, 31
        %s381 = scalar_select %p380, %s377, 31
        %s382 = smul.addr %s379, 32
        %s383 = sadd.s32 %s381, %s382
        %s384 = smul.addr %s383, 4
        %s385 = scalar_lea.vmem %s2, %s384
        %s386 = smul.u32 16, %s27
        %p388 = scmp.eq.s32.totalorder %s27, 0
        // Predicated region
        $region79: #{tpu_custom_call.1} parent=73 // pred_check
          %p389 = pneg %p388
        $region80: #{tpu_custom_call.1} parent=73 // pred_check_branch
          %391 = sbr.rel (%p389) target = $region82
        $region81: #{tpu_custom_call.1} parent=73 // pred_region
          %vm392 = vcmask 7168
          %393 = vst.msk [vmem:[#allocation2] sm:$0xff] %vm392, -inf
          %394 = vst.msk [vmem:[#allocation2 + $0x8] sm:$0xff] %vm392, -inf
          %395 = vst.msk [vmem:[#allocation2 + $0x10] sm:$0xff] %vm392, -inf
          %396 = vst.msk [vmem:[#allocation2 + $0x18] sm:$0xff] %vm392, -inf
          %397 = vst.msk [vmem:[#allocation2 + $0x20] sm:$0xff] %vm392, -inf
          %398 = vst.msk [vmem:[#allocation2 + $0x28] sm:$0xff] %vm392, -inf
          %399 = vst.msk [vmem:[#allocation2 + $0x30] sm:$0xff] %vm392, -inf
          %400 = vst.msk [vmem:[#allocation2 + $0x38] sm:$0xff] %vm392, -inf
          %401 = vst.msk [vmem:[#allocation2 + $0x40] sm:$0xff] %vm392, -inf
          %402 = vst.msk [vmem:[#allocation2 + $0x48] sm:$0xff] %vm392, -inf
          %403 = vst.msk [vmem:[#allocation2 + $0x50] sm:$0xff] %vm392, -inf
          %404 = vst.msk [vmem:[#allocation2 + $0x58] sm:$0xff] %vm392, -inf
          %405 = vst.msk [vmem:[#allocation2 + $0x60] sm:$0xff] %vm392, -inf
          %406 = vst.msk [vmem:[#allocation2 + $0x68] sm:$0xff] %vm392, -inf
          %407 = vst.msk [vmem:[#allocation2 + $0x70] sm:$0xff] %vm392, -inf
          %408 = vst.msk [vmem:[#allocation2 + $0x78] sm:$0xff] %vm392, -inf
          %409 = vst.msk [vmem:[#allocation3] sm:$0xff] %vm392, 0.0
          %410 = vst.msk [vmem:[#allocation3 + $0x8] sm:$0xff] %vm392, 0.0
          %411 = vst.msk [vmem:[#allocation3 + $0x10] sm:$0xff] %vm392, 0.0
          %412 = vst.msk [vmem:[#allocation3 + $0x18] sm:$0xff] %vm392, 0.0
          %413 = vst.msk [vmem:[#allocation3 + $0x20] sm:$0xff] %vm392, 0.0
          %414 = vst.msk [vmem:[#allocation3 + $0x28] sm:$0xff] %vm392, 0.0
          %415 = vst.msk [vmem:[#allocation3 + $0x30] sm:$0xff] %vm392, 0.0
          %416 = vst.msk [vmem:[#allocation3 + $0x38] sm:$0xff] %vm392, 0.0
          %417 = vst.msk [vmem:[#allocation3 + $0x40] sm:$0xff] %vm392, 0.0
          %418 = vst.msk [vmem:[#allocation3 + $0x48] sm:$0xff] %vm392, 0.0
          %419 = vst.msk [vmem:[#allocation3 + $0x50] sm:$0xff] %vm392, 0.0
          %420 = vst.msk [vmem:[#allocation3 + $0x58] sm:$0xff] %vm392, 0.0
          %421 = vst.msk [vmem:[#allocation3 + $0x60] sm:$0xff] %vm392, 0.0
          %422 = vst.msk [vmem:[#allocation3 + $0x68] sm:$0xff] %vm392, 0.0
          %423 = vst.msk [vmem:[#allocation3 + $0x70] sm:$0xff] %vm392, 0.0
          %424 = vst.msk [vmem:[#allocation3 + $0x78] sm:$0xff] %vm392, 0.0
          %vm425 = vcmask 130048
          %426 = vst.msk [vmem:[#allocation4] sm:$0xff] %vm425, 0.0
          %427 = vst.msk [vmem:[#allocation4 + $0x8] sm:$0xff] %vm425, 0.0
          %428 = vst.msk [vmem:[#allocation4 + $0x10] sm:$0xff] %vm425, 0.0
          %429 = vst.msk [vmem:[#allocation4 + $0x18] sm:$0xff] %vm425, 0.0
          %430 = vst.msk [vmem:[#allocation4 + $0x20] sm:$0xff] %vm425, 0.0
          %431 = vst.msk [vmem:[#allocation4 + $0x28] sm:$0xff] %vm425, 0.0
          %432 = vst.msk [vmem:[#allocation4 + $0x30] sm:$0xff] %vm425, 0.0
          %433 = vst.msk [vmem:[#allocation4 + $0x38] sm:$0xff] %vm425, 0.0
          %434 = vst.msk [vmem:[#allocation4 + $0x40] sm:$0xff] %vm425, 0.0
          %435 = vst.msk [vmem:[#allocation4 + $0x48] sm:$0xff] %vm425, 0.0
          %436 = vst.msk [vmem:[#allocation4 + $0x50] sm:$0xff] %vm425, 0.0
          %437 = vst.msk [vmem:[#allocation4 + $0x58] sm:$0xff] %vm425, 0.0
          %438 = vst.msk [vmem:[#allocation4 + $0x60] sm:$0xff] %vm425, 0.0
          %439 = vst.msk [vmem:[#allocation4 + $0x68] sm:$0xff] %vm425, 0.0
          %440 = vst.msk [vmem:[#allocation4 + $0x70] sm:$0xff] %vm425, 0.0
          %441 = vst.msk [vmem:[#allocation4 + $0x78] sm:$0xff] %vm425, 0.0
        $region82: #{tpu_custom_call.1} parent=73 // pred_fallthru
          _
        %v442 = vld [vmem:[%s368] sm:$0xf]
        %v443 = vld [vmem:[%s368 + $0x4] sm:$0xf]
        %v444 = vld [vmem:[%s368 + $0x8] sm:$0xf]
        %v445 = vld [vmem:[%s368 + $0xc] sm:$0xf]
        %v446 = vld [vmem:[%s368 + $0x10] sm:$0xf]
        %v447 = vld [vmem:[%s368 + $0x14] sm:$0xf]
        %v448 = vld [vmem:[%s368 + $0x18] sm:$0xf]
        %v449 = vld [vmem:[%s368 + $0x1c] sm:$0xf]
        %v450 = vld [vmem:[%s368 + $0x20] sm:$0xf]
        %v451 = vld [vmem:[%s368 + $0x24] sm:$0xf]
        %v452 = vld [vmem:[%s368 + $0x28] sm:$0xf]
        %v453 = vld [vmem:[%s368 + $0x2c] sm:$0xf]
        %v454 = vld [vmem:[%s368 + $0x30] sm:$0xf]
        %v455 = vld [vmem:[%s368 + $0x34] sm:$0xf]
        %v456 = vld [vmem:[%s368 + $0x38] sm:$0xf]
        %v457 = vld [vmem:[%s368 + $0x3c] sm:$0xf]
        %v458 = vld [vmem:[%s376] sm:$0x1]
        %v459 = vld [vmem:[%s385] sm:$0xf]
        %v460 = vld [vmem:[%s385 + $0x4] sm:$0xf]
        %v461 = vld [vmem:[%s385 + $0x8] sm:$0xf]
        %v462 = vld [vmem:[%s385 + $0xc] sm:$0xf]
        %v463 = vld [vmem:[%s385 + $0x10] sm:$0xf]
        %v464 = vld [vmem:[%s385 + $0x14] sm:$0xf]
        %v465 = vld [vmem:[%s385 + $0x18] sm:$0xf]
        %v466 = vld [vmem:[%s385 + $0x1c] sm:$0xf]
        %v467 = vld [vmem:[%s385 + $0x20] sm:$0xf]
        %v468 = vld [vmem:[%s385 + $0x24] sm:$0xf]
        %v469 = vld [vmem:[%s385 + $0x28] sm:$0xf]
        %v470 = vld [vmem:[%s385 + $0x2c] sm:$0xf]
        %v471 = vld [vmem:[%s385 + $0x30] sm:$0xf]
        %v472 = vld [vmem:[%s385 + $0x34] sm:$0xf]
        %v473 = vld [vmem:[%s385 + $0x38] sm:$0xf]
        %v474 = vld [vmem:[%s385 + $0x3c] sm:$0xf]
        %v491 = vunpack.c.l.b16 %v442
        %v492 = vunpack.c.l.b16 %v443
        %v493 = vunpack.c.l.b16 %v444
        %v494 = vunpack.c.l.b16 %v445
        %v495 = vunpack.c.l.b16 %v446
        %v496 = vunpack.c.l.b16 %v447
        %v497 = vunpack.c.l.b16 %v448
        %v498 = vunpack.c.l.b16 %v449
        %v499 = vunpack.c.l.b16 %v450
        %v500 = vunpack.c.l.b16 %v451
        %v501 = vunpack.c.l.b16 %v452
        %v502 = vunpack.c.l.b16 %v453
        %v503 = vunpack.c.l.b16 %v454
        %v504 = vunpack.c.l.b16 %v455
        %v505 = vunpack.c.l.b16 %v456
        %v506 = vunpack.c.l.b16 %v457
        %v507 = vpack.c.b16 %v492, %v491
        %v508 = vpack.c.b16 %v494, %v493
        %v509 = vpack.c.b16 %v496, %v495
        %v510 = vpack.c.b16 %v498, %v497
        %v511 = vpack.c.b16 %v500, %v499
        %v512 = vpack.c.b16 %v502, %v501
        %v513 = vpack.c.b16 %v504, %v503
        %v514 = vpack.c.b16 %v506, %v505
        %vm515 = vcmask 15360
        %v517 = vsel %vm515, %v507, 0
        %v520 = vsel %vm515, %v508, 0
        %v523 = vsel %vm515, %v509, 0
        %v526 = vsel %vm515, %v510, 0
        %v529 = vsel %vm515, %v511, 0
        %v532 = vsel %vm515, %v512, 0
        %v535 = vsel %vm515, %v513, 0
        %v538 = vsel %vm515, %v514, 0
        %vm540 = vcmask 1040384
        %v542 = vsel %vm540, %v458, 0
        %544 = vmatprep.subr.bf16.mxu0 0
        %545 = vmatpush1.bf16.msra.mxu0 %v542
        %546 = vmatprep.subr.bf16.mxu0 0
        %547 = vmatpush1.bf16.msra.mxu0 0
        %548 = vmatprep.subr.bf16.mxu0 0
        %549 = vmatpush1.bf16.msra.mxu0 0
        %550 = vmatprep.subr.bf16.mxu0 0
        %551 = vmatpush1.bf16.msra.mxu0 0
        %552 = vmatprep.subr.bf16.mxu0 0
        %553 = vmatpush1.bf16.msra.mxu0 0
        %554 = vmatprep.subr.bf16.mxu0 0
        %555 = vmatpush1.bf16.msra.mxu0 0
        %556 = vmatprep.subr.bf16.mxu0 0
        %557 = vmatpush1.bf16.msra.mxu0 0
        %558 = vmatprep.subr.bf16.mxu0 0
        %559 = vmatpush1.bf16.msra.mxu0 0
        %560 = vmatprep.subr.bf16.mxu0 0
        %561 = vmatpush1.bf16.msra.mxu0 0
        %562 = vmatprep.subr.bf16.mxu0 0
        %563 = vmatpush1.bf16.msra.mxu0 0
        %564 = vmatprep.subr.bf16.mxu0 0
        %565 = vmatpush1.bf16.msra.mxu0 0
        %566 = vmatprep.subr.bf16.mxu0 0
        %567 = vmatpush1.bf16.msra.mxu0 0
        %568 = vmatprep.subr.bf16.mxu0 0
        %569 = vmatpush1.bf16.msra.mxu0 0
        %570 = vmatprep.subr.bf16.mxu0 0
        %571 = vmatpush1.bf16.msra.mxu0 0
        %572 = vmatprep.subr.bf16.mxu0 0
        %573 = vmatpush1.bf16.msra.mxu0 0
        %574 = vmatprep.subr.bf16.mxu0 0
        %575 = vmatpush1.bf16.msra.mxu0 0
        %576 = vmatprep.mubr.bf16.mxu0 0
        %577 = vmatmul.mubr.bf16.gmra.mrb[0].mxu0 %v517
        %v578 = vpop.f32.mrb[0].mxu0
        %v579 = vadd.f32 0.0, %v578
        %v580 = vpop.f32.mrb[0].mxu0
        %v581 = vpop.f32.mrb[0].mxu0
        %v582 = vadd.f32 0.0, %v581
        %v583 = vpop.f32.mrb[0].mxu0
        %584 = vmatprep.mubr.bf16.mxu0 0
        %585 = vmatmul.mubr.bf16.gmra.mrb[0].mxu0 %v520
        %v586 = vpop.f32.mrb[0].mxu0
        %v587 = vadd.f32 0.0, %v586
        %v588 = vpop.f32.mrb[0].mxu0
        %v589 = vpop.f32.mrb[0].mxu0
        %v590 = vadd.f32 0.0, %v589
        %v591 = vpop.f32.mrb[0].mxu0
        %592 = vmatprep.mubr.bf16.mxu0 0
        %593 = vmatmul.mubr.bf16.gmra.mrb[0].mxu0 %v523
        %v594 = vpop.f32.mrb[0].mxu0
        %v595 = vadd.f32 0.0, %v594
        %v596 = vpop.f32.mrb[0].mxu0
        %v597 = vpop.f32.mrb[0].mxu0
        %v598 = vadd.f32 0.0, %v597
        %v599 = vpop.f32.mrb[0].mxu0
        %600 = vmatprep.mubr.bf16.mxu0 0
        %601 = vmatmul.mubr.bf16.gmra.mrb[0].mxu0 %v526
        %v602 = vpop.f32.mrb[0].mxu0
        %v603 = vadd.f32 0.0, %v602
        %v604 = vpop.f32.mrb[0].mxu0
        %v605 = vpop.f32.mrb[0].mxu0
        %v606 = vadd.f32 0.0, %v605
        %v607 = vpop.f32.mrb[0].mxu0
        %608 = vmatprep.mubr.bf16.mxu0 0
        %609 = vmatmul.mubr.bf16.gmra.mrb[0].mxu0 %v529
        %v610 = vpop.f32.mrb[0].mxu0
        %v611 = vadd.f32 0.0, %v610
        %v612 = vpop.f32.mrb[0].mxu0
        %v613 = vpop.f32.mrb[0].mxu0
        %v614 = vadd.f32 0.0, %v613
        %v615 = vpop.f32.mrb[0].mxu0
        %616 = vmatprep.mubr.bf16.mxu0 0
        %617 = vmatmul.mubr.bf16.gmra.mrb[0].mxu0 %v532
        %v618 = vpop.f32.mrb[0].mxu0
        %v619 = vadd.f32 0.0, %v618
        %v620 = vpop.f32.mrb[0].mxu0
        %v621 = vpop.f32.mrb[0].mxu0
        %v622 = vadd.f32 0.0, %v621
        %v623 = vpop.f32.mrb[0].mxu0
        %624 = vmatprep.mubr.bf16.mxu0 0
        %625 = vmatmul.mubr.bf16.gmra.mrb[0].mxu0 %v535
        %v626 = vpop.f32.mrb[0].mxu0
        %v627 = vadd.f32 0.0, %v626
        %v628 = vpop.f32.mrb[0].mxu0
        %v629 = vpop.f32.mrb[0].mxu0
        %v630 = vadd.f32 0.0, %v629
        %v631 = vpop.f32.mrb[0].mxu0
        %632 = vmatprep.mubr.bf16.mxu0 0
        %633 = vmatmul.mubr.bf16.gmra.mrb[0].mxu0 %v538
        %v634 = vpop.f32.mrb[0].mxu0
        %v635 = vadd.f32 0.0, %v634
        %v636 = vpop.f32.mrb[0].mxu0
        %v637 = vpop.f32.mrb[0].mxu0
        %v638 = vadd.f32 0.0, %v637
        %v639 = vpop.f32.mrb[0].mxu0
        %640 = vdwg.mxu0
        %v641 = vld [vmem:[#allocation2] sm:$0xff]
        %v642 = vld [vmem:[#allocation2 + $0x8] sm:$0xff]
        %v643 = vld [vmem:[#allocation2 + $0x10] sm:$0xff]
        %v644 = vld [vmem:[#allocation2 + $0x18] sm:$0xff]
        %v645 = vld [vmem:[#allocation2 + $0x20] sm:$0xff]
        %v646 = vld [vmem:[#allocation2 + $0x28] sm:$0xff]
        %v647 = vld [vmem:[#allocation2 + $0x30] sm:$0xff]
        %v648 = vld [vmem:[#allocation2 + $0x38] sm:$0xff]
        %v649 = vld [vmem:[#allocation2 + $0x40] sm:$0xff]
        %v650 = vld [vmem:[#allocation2 + $0x48] sm:$0xff]
        %v651 = vld [vmem:[#allocation2 + $0x50] sm:$0xff]
        %v652 = vld [vmem:[#allocation2 + $0x58] sm:$0xff]
        %v653 = vld [vmem:[#allocation2 + $0x60] sm:$0xff]
        %v654 = vld [vmem:[#allocation2 + $0x68] sm:$0xff]
        %v655 = vld [vmem:[#allocation2 + $0x70] sm:$0xff]
        %v656 = vld [vmem:[#allocation2 + $0x78] sm:$0xff]
        %657 = vmax.xlane.f32.xlu0 %v579
        %v658 = vpop.xlane.xlu0 %657
        %659 = vmax.xlane.f32.xlu0 %v582
        %v660 = vpop.xlane.xlu0 %659
        %661 = vmax.xlane.f32.xlu0 %v587
        %v662 = vpop.xlane.xlu0 %661
        %663 = vmax.xlane.f32.xlu0 %v590
        %v664 = vpop.xlane.xlu0 %663
        %665 = vmax.xlane.f32.xlu0 %v595
        %v666 = vpop.xlane.xlu0 %665
        %667 = vmax.xlane.f32.xlu0 %v598
        %v668 = vpop.xlane.xlu0 %667
        %669 = vmax.xlane.f32.xlu0 %v603
        %v670 = vpop.xlane.xlu0 %669
        %671 = vmax.xlane.f32.xlu0 %v606
        %v672 = vpop.xlane.xlu0 %671
        %673 = vmax.xlane.f32.xlu0 %v611
        %v674 = vpop.xlane.xlu0 %673
        %675 = vmax.xlane.f32.xlu0 %v614
        %v676 = vpop.xlane.xlu0 %675
        %677 = vmax.xlane.f32.xlu0 %v619
        %v678 = vpop.xlane.xlu0 %677
        %679 = vmax.xlane.f32.xlu0 %v622
        %v680 = vpop.xlane.xlu0 %679
        %681 = vmax.xlane.f32.xlu0 %v627
        %v682 = vpop.xlane.xlu0 %681
        %683 = vmax.xlane.f32.xlu0 %v630
        %v684 = vpop.xlane.xlu0 %683
        %685 = vmax.xlane.f32.xlu0 %v635
        %v686 = vpop.xlane.xlu0 %685
        %687 = vmax.xlane.f32.xlu0 %v638
        %v688 = vpop.xlane.xlu0 %687
        %v689 = vmax.f32 %v641, %v658
        %v690 = vmax.f32 %v642, %v660
        %v691 = vmax.f32 %v643, %v662
        %v692 = vmax.f32 %v644, %v664
        %v693 = vmax.f32 %v645, %v666
        %v694 = vmax.f32 %v646, %v668
        %v695 = vmax.f32 %v647, %v670
        %v696 = vmax.f32 %v648, %v672
        %v697 = vmax.f32 %v649, %v674
        %v698 = vmax.f32 %v650, %v676
        %v699 = vmax.f32 %v651, %v678
        %v700 = vmax.f32 %v652, %v680
        %v701 = vmax.f32 %v653, %v682
        %v702 = vmax.f32 %v654, %v684
        %v703 = vmax.f32 %v655, %v686
        %v704 = vmax.f32 %v656, %v688
        %v705 = vsub.f32 %v641, %v689
        %v706 = vsub.f32 %v642, %v690
        %v707 = vsub.f32 %v643, %v691
        %v708 = vsub.f32 %v644, %v692
        %v709 = vsub.f32 %v645, %v693
        %v710 = vsub.f32 %v646, %v694
        %v711 = vsub.f32 %v647, %v695
        %v712 = vsub.f32 %v648, %v696
        %v713 = vsub.f32 %v649, %v697
        %v714 = vsub.f32 %v650, %v698
        %v715 = vsub.f32 %v651, %v699
        %v716 = vsub.f32 %v652, %v700
        %v717 = vsub.f32 %v653, %v701
        %v718 = vsub.f32 %v654, %v702
        %v719 = vsub.f32 %v655, %v703
        %v720 = vsub.f32 %v656, %v704
        %v721 = vmul.f32 %v705, 1.442695
        %v722 = vpow.pop %v721
        %v723 = vmul.f32 %v706, 1.442695
        %v724 = vpow.pop %v723
        %v725 = vmul.f32 %v707, 1.442695
        %v726 = vpow.pop %v725
        %v727 = vmul.f32 %v708, 1.442695
        %v728 = vpow.pop %v727
        %v729 = vmul.f32 %v709, 1.442695
        %v730 = vpow.pop %v729
        %v731 = vmul.f32 %v710, 1.442695
        %v732 = vpow.pop %v731
        %v733 = vmul.f32 %v711, 1.442695
        %v734 = vpow.pop %v733
        %v735 = vmul.f32 %v712, 1.442695
        %v736 = vpow.pop %v735
        %v737 = vmul.f32 %v713, 1.442695
        %v738 = vpow.pop %v737
        %v739 = vmul.f32 %v714, 1.442695
        %v740 = vpow.pop %v739
        %v741 = vmul.f32 %v715, 1.442695
        %v742 = vpow.pop %v741
        %v743 = vmul.f32 %v716, 1.442695
        %v744 = vpow.pop %v743
        %v745 = vmul.f32 %v717, 1.442695
        %v746 = vpow.pop %v745
        %v747 = vmul.f32 %v718, 1.442695
        %v748 = vpow.pop %v747
        %v749 = vmul.f32 %v719, 1.442695
        %v750 = vpow.pop %v749
        %v751 = vmul.f32 %v720, 1.442695
        %v752 = vpow.pop %v751
        %754 = vset.pattern.permute.xlu0 0
        %755 = vperm.xlu0 %754, %v689
        %v756 = vpop.permute.xlu0 %755
        %759 = vset.pattern.permute.xlu0 0
        %760 = vperm.xlu0 %759, %v690
        %v761 = vpop.permute.xlu0 %760
        %764 = vset.pattern.permute.xlu0 0
        %765 = vperm.xlu0 %764, %v691
        %v766 = vpop.permute.xlu0 %765
        %769 = vset.pattern.permute.xlu0 0
        %770 = vperm.xlu0 %769, %v692
        %v771 = vpop.permute.xlu0 %770
        %774 = vset.pattern.permute.xlu0 0
        %775 = vperm.xlu0 %774, %v693
        %v776 = vpop.permute.xlu0 %775
        %779 = vset.pattern.permute.xlu0 0
        %780 = vperm.xlu0 %779, %v694
        %v781 = vpop.permute.xlu0 %780
        %784 = vset.pattern.permute.xlu0 0
        %785 = vperm.xlu0 %784, %v695
        %v786 = vpop.permute.xlu0 %785
        %789 = vset.pattern.permute.xlu0 0
        %790 = vperm.xlu0 %789, %v696
        %v791 = vpop.permute.xlu0 %790
        %794 = vset.pattern.permute.xlu0 0
        %795 = vperm.xlu0 %794, %v697
        %v796 = vpop.permute.xlu0 %795
        %799 = vset.pattern.permute.xlu0 0
        %800 = vperm.xlu0 %799, %v698
        %v801 = vpop.permute.xlu0 %800
        %804 = vset.pattern.permute.xlu0 0
        %805 = vperm.xlu0 %804, %v699
        %v806 = vpop.permute.xlu0 %805
        %809 = vset.pattern.permute.xlu0 0
        %810 = vperm.xlu0 %809, %v700
        %v811 = vpop.permute.xlu0 %810
        %814 = vset.pattern.permute.xlu0 0
        %815 = vperm.xlu0 %814, %v701
        %v816 = vpop.permute.xlu0 %815
        %819 = vset.pattern.permute.xlu0 0
        %820 = vperm.xlu0 %819, %v702
        %v821 = vpop.permute.xlu0 %820
        %824 = vset.pattern.permute.xlu0 0
        %825 = vperm.xlu0 %824, %v703
        %v826 = vpop.permute.xlu0 %825
        %829 = vset.pattern.permute.xlu0 0
        %830 = vperm.xlu0 %829, %v704
        %v831 = vpop.permute.xlu0 %830
        %v833 = vsub.f32 %v579, %v756
        %v834 = vsub.f32 %v582, %v761
        %v835 = vsub.f32 %v587, %v766
        %v836 = vsub.f32 %v590, %v771
        %v837 = vsub.f32 %v595, %v776
        %v838 = vsub.f32 %v598, %v781
        %v839 = vsub.f32 %v603, %v786
        %v840 = vsub.f32 %v606, %v791
        %v841 = vsub.f32 %v611, %v796
        %v842 = vsub.f32 %v614, %v801
        %v843 = vsub.f32 %v619, %v806
        %v844 = vsub.f32 %v622, %v811
        %v845 = vsub.f32 %v627, %v816
        %v846 = vsub.f32 %v630, %v821
        %v847 = vsub.f32 %v635, %v826
        %v848 = vsub.f32 %v638, %v831
        %v849 = vmul.f32 %v833, 1.442695
        %v850 = vpow.pop %v849
        %v851 = vmul.f32 %v834, 1.442695
        %v852 = vpow.pop %v851
        %v853 = vmul.f32 %v835, 1.442695
        %v854 = vpow.pop %v853
        %v855 = vmul.f32 %v836, 1.442695
        %v856 = vpow.pop %v855
        %v857 = vmul.f32 %v837, 1.442695
        %v858 = vpow.pop %v857
        %v859 = vmul.f32 %v838, 1.442695
        %v860 = vpow.pop %v859
        %v861 = vmul.f32 %v839, 1.442695
        %v862 = vpow.pop %v861
        %v863 = vmul.f32 %v840, 1.442695
        %v864 = vpow.pop %v863
        %v865 = vmul.f32 %v841, 1.442695
        %v866 = vpow.pop %v865
        %v867 = vmul.f32 %v842, 1.442695
        %v868 = vpow.pop %v867
        %v869 = vmul.f32 %v843, 1.442695
        %v870 = vpow.pop %v869
        %v871 = vmul.f32 %v844, 1.442695
        %v872 = vpow.pop %v871
        %v873 = vmul.f32 %v845, 1.442695
        %v874 = vpow.pop %v873
        %v875 = vmul.f32 %v846, 1.442695
        %v876 = vpow.pop %v875
        %v877 = vmul.f32 %v847, 1.442695
        %v878 = vpow.pop %v877
        %v879 = vmul.f32 %v848, 1.442695
        %v880 = vpow.pop %v879
        %v881 = vld [vmem:[#allocation3] sm:$0xff]
        %v882 = vld [vmem:[#allocation3 + $0x8] sm:$0xff]
        %v883 = vld [vmem:[#allocation3 + $0x10] sm:$0xff]
        %v884 = vld [vmem:[#allocation3 + $0x18] sm:$0xff]
        %v885 = vld [vmem:[#allocation3 + $0x20] sm:$0xff]
        %v886 = vld [vmem:[#allocation3 + $0x28] sm:$0xff]
        %v887 = vld [vmem:[#allocation3 + $0x30] sm:$0xff]
        %v888 = vld [vmem:[#allocation3 + $0x38] sm:$0xff]
        %v889 = vld [vmem:[#allocation3 + $0x40] sm:$0xff]
        %v890 = vld [vmem:[#allocation3 + $0x48] sm:$0xff]
        %v891 = vld [vmem:[#allocation3 + $0x50] sm:$0xff]
        %v892 = vld [vmem:[#allocation3 + $0x58] sm:$0xff]
        %v893 = vld [vmem:[#allocation3 + $0x60] sm:$0xff]
        %v894 = vld [vmem:[#allocation3 + $0x68] sm:$0xff]
        %v895 = vld [vmem:[#allocation3 + $0x70] sm:$0xff]
        %v896 = vld [vmem:[#allocation3 + $0x78] sm:$0xff]
        %v897 = vmul.f32 %v722, %v881
        %v898 = vmul.f32 %v724, %v882
        %v899 = vmul.f32 %v726, %v883
        %v900 = vmul.f32 %v728, %v884
        %v901 = vmul.f32 %v730, %v885
        %v902 = vmul.f32 %v732, %v886
        %v903 = vmul.f32 %v734, %v887
        %v904 = vmul.f32 %v736, %v888
        %v905 = vmul.f32 %v738, %v889
        %v906 = vmul.f32 %v740, %v890
        %v907 = vmul.f32 %v742, %v891
        %v908 = vmul.f32 %v744, %v892
        %v909 = vmul.f32 %v746, %v893
        %v910 = vmul.f32 %v748, %v894
        %v911 = vmul.f32 %v750, %v895
        %v912 = vmul.f32 %v752, %v896
        %913 = vadd.xlane.f32.xlu0 %v850
        %v914 = vpop.xlane.xlu0 %913
        %915 = vadd.xlane.f32.xlu0 %v852
        %v916 = vpop.xlane.xlu0 %915
        %917 = vadd.xlane.f32.xlu0 %v854
        %v918 = vpop.xlane.xlu0 %917
        %919 = vadd.xlane.f32.xlu0 %v856
        %v920 = vpop.xlane.xlu0 %919
        %921 = vadd.xlane.f32.xlu0 %v858
        %v922 = vpop.xlane.xlu0 %921
        %923 = vadd.xlane.f32.xlu0 %v860
        %v924 = vpop.xlane.xlu0 %923
        %925 = vadd.xlane.f32.xlu0 %v862
        %v926 = vpop.xlane.xlu0 %925
        %927 = vadd.xlane.f32.xlu0 %v864
        %v928 = vpop.xlane.xlu0 %927
        %929 = vadd.xlane.f32.xlu0 %v866
        %v930 = vpop.xlane.xlu0 %929
        %931 = vadd.xlane.f32.xlu0 %v868
        %v932 = vpop.xlane.xlu0 %931
        %933 = vadd.xlane.f32.xlu0 %v870
        %v934 = vpop.xlane.xlu0 %933
        %935 = vadd.xlane.f32.xlu0 %v872
        %v936 = vpop.xlane.xlu0 %935
        %937 = vadd.xlane.f32.xlu0 %v874
        %v938 = vpop.xlane.xlu0 %937
        %939 = vadd.xlane.f32.xlu0 %v876
        %v940 = vpop.xlane.xlu0 %939
        %941 = vadd.xlane.f32.xlu0 %v878
        %v942 = vpop.xlane.xlu0 %941
        %943 = vadd.xlane.f32.xlu0 %v880
        %v944 = vpop.xlane.xlu0 %943
        %v945 = vadd.f32 %v897, %v914
        %v946 = vadd.f32 %v898, %v916
        %v947 = vadd.f32 %v899, %v918
        %v948 = vadd.f32 %v900, %v920
        %v949 = vadd.f32 %v901, %v922
        %v950 = vadd.f32 %v902, %v924
        %v951 = vadd.f32 %v903, %v926
        %v952 = vadd.f32 %v904, %v928
        %v953 = vadd.f32 %v905, %v930
        %v954 = vadd.f32 %v906, %v932
        %v955 = vadd.f32 %v907, %v934
        %v956 = vadd.f32 %v908, %v936
        %v957 = vadd.f32 %v909, %v938
        %v958 = vadd.f32 %v910, %v940
        %v959 = vadd.f32 %v911, %v942
        %v960 = vadd.f32 %v912, %v944
        %vm961 = vcmask 7168
        %962 = vst.msk [vmem:[#allocation3] sm:$0xff] %vm961, %v945
        %963 = vst.msk [vmem:[#allocation3 + $0x8] sm:$0xff] %vm961, %v946
        %964 = vst.msk [vmem:[#allocation3 + $0x10] sm:$0xff] %vm961, %v947
        %965 = vst.msk [vmem:[#allocation3 + $0x18] sm:$0xff] %vm961, %v948
        %966 = vst.msk [vmem:[#allocation3 + $0x20] sm:$0xff] %vm961, %v949
        %967 = vst.msk [vmem:[#allocation3 + $0x28] sm:$0xff] %vm961, %v950
        %968 = vst.msk [vmem:[#allocation3 + $0x30] sm:$0xff] %vm961, %v951
        %969 = vst.msk [vmem:[#allocation3 + $0x38] sm:$0xff] %vm961, %v952
        %970 = vst.msk [vmem:[#allocation3 + $0x40] sm:$0xff] %vm961, %v953
        %971 = vst.msk [vmem:[#allocation3 + $0x48] sm:$0xff] %vm961, %v954
        %972 = vst.msk [vmem:[#allocation3 + $0x50] sm:$0xff] %vm961, %v955
        %973 = vst.msk [vmem:[#allocation3 + $0x58] sm:$0xff] %vm961, %v956
        %974 = vst.msk [vmem:[#allocation3 + $0x60] sm:$0xff] %vm961, %v957
        %975 = vst.msk [vmem:[#allocation3 + $0x68] sm:$0xff] %vm961, %v958
        %976 = vst.msk [vmem:[#allocation3 + $0x70] sm:$0xff] %vm961, %v959
        %977 = vst.msk [vmem:[#allocation3 + $0x78] sm:$0xff] %vm961, %v960
        %v978 = vld [vmem:[#allocation4] sm:$0xff]
        %v979 = vld [vmem:[#allocation4 + $0x8] sm:$0xff]
        %v980 = vld [vmem:[#allocation4 + $0x10] sm:$0xff]
        %v981 = vld [vmem:[#allocation4 + $0x18] sm:$0xff]
        %v982 = vld [vmem:[#allocation4 + $0x20] sm:$0xff]
        %v983 = vld [vmem:[#allocation4 + $0x28] sm:$0xff]
        %v984 = vld [vmem:[#allocation4 + $0x30] sm:$0xff]
        %v985 = vld [vmem:[#allocation4 + $0x38] sm:$0xff]
        %v986 = vld [vmem:[#allocation4 + $0x40] sm:$0xff]
        %v987 = vld [vmem:[#allocation4 + $0x48] sm:$0xff]
        %v988 = vld [vmem:[#allocation4 + $0x50] sm:$0xff]
        %v989 = vld [vmem:[#allocation4 + $0x58] sm:$0xff]
        %v990 = vld [vmem:[#allocation4 + $0x60] sm:$0xff]
        %v991 = vld [vmem:[#allocation4 + $0x68] sm:$0xff]
        %v992 = vld [vmem:[#allocation4 + $0x70] sm:$0xff]
        %v993 = vld [vmem:[#allocation4 + $0x78] sm:$0xff]
        %995 = vset.pattern.permute.xlu0 0
        %996 = vperm.xlu0 %995, %v722
        %v997 = vpop.permute.xlu0 %996
        %1000 = vset.pattern.permute.xlu0 0
        %1001 = vperm.xlu0 %1000, %v724
        %v1002 = vpop.permute.xlu0 %1001
        %1005 = vset.pattern.permute.xlu0 0
        %1006 = vperm.xlu0 %1005, %v726
        %v1007 = vpop.permute.xlu0 %1006
        %1010 = vset.pattern.permute.xlu0 0
        %1011 = vperm.xlu0 %1010, %v728
        %v1012 = vpop.permute.xlu0 %1011
        %1015 = vset.pattern.permute.xlu0 0
        %1016 = vperm.xlu0 %1015, %v730
        %v1017 = vpop.permute.xlu0 %1016
        %1020 = vset.pattern.permute.xlu0 0
        %1021 = vperm.xlu0 %1020, %v732
        %v1022 = vpop.permute.xlu0 %1021
        %1025 = vset.pattern.permute.xlu0 0
        %1026 = vperm.xlu0 %1025, %v734
        %v1027 = vpop.permute.xlu0 %1026
        %1030 = vset.pattern.permute.xlu0 0
        %1031 = vperm.xlu0 %1030, %v736
        %v1032 = vpop.permute.xlu0 %1031
        %1035 = vset.pattern.permute.xlu0 0
        %1036 = vperm.xlu0 %1035, %v738
        %v1037 = vpop.permute.xlu0 %1036
        %1040 = vset.pattern.permute.xlu0 0
        %1041 = vperm.xlu0 %1040, %v740
        %v1042 = vpop.permute.xlu0 %1041
        %1045 = vset.pattern.permute.xlu0 0
        %1046 = vperm.xlu0 %1045, %v742
        %v1047 = vpop.permute.xlu0 %1046
        %1050 = vset.pattern.permute.xlu0 0
        %1051 = vperm.xlu0 %1050, %v744
        %v1052 = vpop.permute.xlu0 %1051
        %1055 = vset.pattern.permute.xlu0 0
        %1056 = vperm.xlu0 %1055, %v746
        %v1057 = vpop.permute.xlu0 %1056
        %1060 = vset.pattern.permute.xlu0 0
        %1061 = vperm.xlu0 %1060, %v748
        %v1062 = vpop.permute.xlu0 %1061
        %1065 = vset.pattern.permute.xlu0 0
        %1066 = vperm.xlu0 %1065, %v750
        %v1067 = vpop.permute.xlu0 %1066
        %1070 = vset.pattern.permute.xlu0 0
        %1071 = vperm.xlu0 %1070, %v752
        %v1072 = vpop.permute.xlu0 %1071
        %v1074 = vmul.f32 %v997, %v978
        %v1075 = vmul.f32 %v1002, %v979
        %v1076 = vmul.f32 %v1007, %v980
        %v1077 = vmul.f32 %v1012, %v981
        %v1078 = vmul.f32 %v1017, %v982
        %v1079 = vmul.f32 %v1022, %v983
        %v1080 = vmul.f32 %v1027, %v984
        %v1081 = vmul.f32 %v1032, %v985
        %v1082 = vmul.f32 %v1037, %v986
        %v1083 = vmul.f32 %v1042, %v987
        %v1084 = vmul.f32 %v1047, %v988
        %v1085 = vmul.f32 %v1052, %v989
        %v1086 = vmul.f32 %v1057, %v990
        %v1087 = vmul.f32 %v1062, %v991
        %v1088 = vmul.f32 %v1067, %v992
        %v1089 = vmul.f32 %v1072, %v993
        %v1090 = vpack.c.bf16 %v852, %v850
        %v1091 = vpack.c.bf16 %v856, %v854
        %v1092 = vpack.c.bf16 %v860, %v858
        %v1093 = vpack.c.bf16 %v864, %v862
        %v1094 = vpack.c.bf16 %v868, %v866
        %v1095 = vpack.c.bf16 %v872, %v870
        %v1096 = vpack.c.bf16 %v876, %v874
        %v1097 = vpack.c.bf16 %v880, %v878
        %v1114 = vunpack.c.l.b16 %v459
        %v1115 = vunpack.c.l.b16 %v460
        %v1116 = vunpack.c.l.b16 %v461
        %v1117 = vunpack.c.l.b16 %v462
        %v1118 = vunpack.c.l.b16 %v463
        %v1119 = vunpack.c.l.b16 %v464
        %v1120 = vunpack.c.l.b16 %v465
        %v1121 = vunpack.c.l.b16 %v466
        %v1122 = vunpack.c.l.b16 %v467
        %v1123 = vunpack.c.l.b16 %v468
        %v1124 = vunpack.c.l.b16 %v469
        %v1125 = vunpack.c.l.b16 %v470
        %v1126 = vunpack.c.l.b16 %v471
        %v1127 = vunpack.c.l.b16 %v472
        %v1128 = vunpack.c.l.b16 %v473
        %v1129 = vunpack.c.l.b16 %v474
        %v1130 = vpack.c.b16 %v1115, %v1114
        %v1131 = vpack.c.b16 %v1117, %v1116
        %v1132 = vpack.c.b16 %v1119, %v1118
        %v1133 = vpack.c.b16 %v1121, %v1120
        %v1134 = vpack.c.b16 %v1123, %v1122
        %v1135 = vpack.c.b16 %v1125, %v1124
        %v1136 = vpack.c.b16 %v1127, %v1126
        %v1137 = vpack.c.b16 %v1129, %v1128
        %1146 = vmatprep.subr.bf16.mxu0 0
        %1147 = vmatpush1.bf16.msra.mxu0 %v1130
        %1148 = vmatprep.subr.bf16.mxu0 0
        %1149 = vmatpush1.bf16.msra.mxu0 %v1131
        %1150 = vmatprep.subr.bf16.mxu0 0
        %1151 = vmatpush1.bf16.msra.mxu0 %v1132
        %1152 = vmatprep.subr.bf16.mxu0 0
        %1153 = vmatpush1.bf16.msra.mxu0 %v1133
        %1154 = vmatprep.subr.bf16.mxu0 0
        %1155 = vmatpush1.bf16.msra.mxu0 %v1134
        %1156 = vmatprep.subr.bf16.mxu0 0
        %1157 = vmatpush1.bf16.msra.mxu0 %v1135
        %1158 = vmatprep.subr.bf16.mxu0 0
        %1159 = vmatpush1.bf16.msra.mxu0 %v1136
        %1160 = vmatprep.subr.bf16.mxu0 0
        %1161 = vmatpush1.bf16.msra.mxu0 %v1137
        %1162 = vmatprep.subr.bf16.mxu0 0
        %1163 = vmatpush1.bf16.msra.mxu0 0
        %1164 = vmatprep.subr.bf16.mxu0 0
        %1165 = vmatpush1.bf16.msra.mxu0 0
        %1166 = vmatprep.subr.bf16.mxu0 0
        %1167 = vmatpush1.bf16.msra.mxu0 0
        %1168 = vmatprep.subr.bf16.mxu0 0
        %1169 = vmatpush1.bf16.msra.mxu0 0
        %1170 = vmatprep.subr.bf16.mxu0 0
        %1171 = vmatpush1.bf16.msra.mxu0 0
        %1172 = vmatprep.subr.bf16.mxu0 0
        %1173 = vmatpush1.bf16.msra.mxu0 0
        %1174 = vmatprep.subr.bf16.mxu0 0
        %1175 = vmatpush1.bf16.msra.mxu0 0
        %1176 = vmatprep.subr.bf16.mxu0 0
        %1177 = vmatpush1.bf16.msra.mxu0 0
        %1178 = vmatprep.mubr.bf16.mxu0 0
        %1179 = vmatmul.mubr.bf16.gmra.mrb[0].mxu0 %v1090
        %v1180 = vpop.f32.mrb[0].mxu0
        %v1181 = vadd.f32 0.0, %v1180
        %v1182 = vpop.f32.mrb[0].mxu0
        %v1183 = vpop.f32.mrb[0].mxu0
        %v1184 = vadd.f32 0.0, %v1183
        %v1185 = vpop.f32.mrb[0].mxu0
        %1186 = vmatprep.mubr.bf16.mxu0 0
        %1187 = vmatmul.mubr.bf16.gmra.mrb[0].mxu0 %v1091
        %v1188 = vpop.f32.mrb[0].mxu0
        %v1189 = vadd.f32 0.0, %v1188
        %v1190 = vpop.f32.mrb[0].mxu0
        %v1191 = vpop.f32.mrb[0].mxu0
        %v1192 = vadd.f32 0.0, %v1191
        %v1193 = vpop.f32.mrb[0].mxu0
        %1194 = vmatprep.mubr.bf16.mxu0 0
        %1195 = vmatmul.mubr.bf16.gmra.mrb[0].mxu0 %v1092
        %v1196 = vpop.f32.mrb[0].mxu0
        %v1197 = vadd.f32 0.0, %v1196
        %v1198 = vpop.f32.mrb[0].mxu0
        %v1199 = vpop.f32.mrb[0].mxu0
        %v1200 = vadd.f32 0.0, %v1199
        %v1201 = vpop.f32.mrb[0].mxu0
        %1202 = vmatprep.mubr.bf16.mxu0 0
        %1203 = vmatmul.mubr.bf16.gmra.mrb[0].mxu0 %v1093
        %v1204 = vpop.f32.mrb[0].mxu0
        %v1205 = vadd.f32 0.0, %v1204
        %v1206 = vpop.f32.mrb[0].mxu0
        %v1207 = vpop.f32.mrb[0].mxu0
        %v1208 = vadd.f32 0.0, %v1207
        %v1209 = vpop.f32.mrb[0].mxu0
        %1210 = vmatprep.mubr.bf16.mxu0 0
        %1211 = vmatmul.mubr.bf16.gmra.mrb[0].mxu0 %v1094
        %v1212 = vpop.f32.mrb[0].mxu0
        %v1213 = vadd.f32 0.0, %v1212
        %v1214 = vpop.f32.mrb[0].mxu0
        %v1215 = vpop.f32.mrb[0].mxu0
        %v1216 = vadd.f32 0.0, %v1215
        %v1217 = vpop.f32.mrb[0].mxu0
        %1218 = vmatprep.mubr.bf16.mxu0 0
        %1219 = vmatmul.mubr.bf16.gmra.mrb[0].mxu0 %v1095
        %v1220 = vpop.f32.mrb[0].mxu0
        %v1221 = vadd.f32 0.0, %v1220
        %v1222 = vpop.f32.mrb[0].mxu0
        %v1223 = vpop.f32.mrb[0].mxu0
        %v1224 = vadd.f32 0.0, %v1223
        %v1225 = vpop.f32.mrb[0].mxu0
        %1226 = vmatprep.mubr.bf16.mxu0 0
        %1227 = vmatmul.mubr.bf16.gmra.mrb[0].mxu0 %v1096
        %v1228 = vpop.f32.mrb[0].mxu0
        %v1229 = vadd.f32 0.0, %v1228
        %v1230 = vpop.f32.mrb[0].mxu0
        %v1231 = vpop.f32.mrb[0].mxu0
        %v1232 = vadd.f32 0.0, %v1231
        %v1233 = vpop.f32.mrb[0].mxu0
        %1234 = vmatprep.mubr.bf16.mxu0 0
        %1235 = vmatmul.mubr.bf16.gmra.mrb[0].mxu0 %v1097
        %v1236 = vpop.f32.mrb[0].mxu0
        %v1237 = vadd.f32 0.0, %v1236
        %v1238 = vpop.f32.mrb[0].mxu0
        %v1239 = vpop.f32.mrb[0].mxu0
        %v1240 = vadd.f32 0.0, %v1239
        %v1241 = vpop.f32.mrb[0].mxu0
        %1242 = vdwg.mxu0
        %v1243 = vadd.f32 %v1074, %v1181
        %v1244 = vadd.f32 %v1075, %v1184
        %v1245 = vadd.f32 %v1076, %v1189
        %v1246 = vadd.f32 %v1077, %v1192
        %v1247 = vadd.f32 %v1078, %v1197
        %v1248 = vadd.f32 %v1079, %v1200
        %v1249 = vadd.f32 %v1080, %v1205
        %v1250 = vadd.f32 %v1081, %v1208
        %v1251 = vadd.f32 %v1082, %v1213
        %v1252 = vadd.f32 %v1083, %v1216
        %v1253 = vadd.f32 %v1084, %v1221
        %v1254 = vadd.f32 %v1085, %v1224
        %v1255 = vadd.f32 %v1086, %v1229
        %v1256 = vadd.f32 %v1087, %v1232
        %v1257 = vadd.f32 %v1088, %v1237
        %v1258 = vadd.f32 %v1089, %v1240
        %vm1259 = vcmask 130048
        %1260 = vst.msk [vmem:[#allocation4] sm:$0xff] %vm1259, %v1243
        %1261 = vst.msk [vmem:[#allocation4 + $0x8] sm:$0xff] %vm1259, %v1244
        %1262 = vst.msk [vmem:[#allocation4 + $0x10] sm:$0xff] %vm1259, %v1245
        %1263 = vst.msk [vmem:[#allocation4 + $0x18] sm:$0xff] %vm1259, %v1246
        %1264 = vst.msk [vmem:[#allocation4 + $0x20] sm:$0xff] %vm1259, %v1247
        %1265 = vst.msk [vmem:[#allocation4 + $0x28] sm:$0xff] %vm1259, %v1248
        %1266 = vst.msk [vmem:[#allocation4 + $0x30] sm:$0xff] %vm1259, %v1249
        %1267 = vst.msk [vmem:[#allocation4 + $0x38] sm:$0xff] %vm1259, %v1250
        %1268 = vst.msk [vmem:[#allocation4 + $0x40] sm:$0xff] %vm1259, %v1251
        %1269 = vst.msk [vmem:[#allocation4 + $0x48] sm:$0xff] %vm1259, %v1252
        %1270 = vst.msk [vmem:[#allocation4 + $0x50] sm:$0xff] %vm1259, %v1253
        %1271 = vst.msk [vmem:[#allocation4 + $0x58] sm:$0xff] %vm1259, %v1254
        %1272 = vst.msk [vmem:[#allocation4 + $0x60] sm:$0xff] %vm1259, %v1255
        %1273 = vst.msk [vmem:[#allocation4 + $0x68] sm:$0xff] %vm1259, %v1256
        %1274 = vst.msk [vmem:[#allocation4 + $0x70] sm:$0xff] %vm1259, %v1257
        %1275 = vst.msk [vmem:[#allocation4 + $0x78] sm:$0xff] %vm1259, %v1258
        %1276 = vst.msk [vmem:[#allocation2] sm:$0xff] %vm961, %v689
        %1277 = vst.msk [vmem:[#allocation2 + $0x8] sm:$0xff] %vm961, %v690
        %1278 = vst.msk [vmem:[#allocation2 + $0x10] sm:$0xff] %vm961, %v691
        %1279 = vst.msk [vmem:[#allocation2 + $0x18] sm:$0xff] %vm961, %v692
        %1280 = vst.msk [vmem:[#allocation2 + $0x20] sm:$0xff] %vm961, %v693
        %1281 = vst.msk [vmem:[#allocation2 + $0x28] sm:$0xff] %vm961, %v694
        %1282 = vst.msk [vmem:[#allocation2 + $0x30] sm:$0xff] %vm961, %v695
        %1283 = vst.msk [vmem:[#allocation2 + $0x38] sm:$0xff] %vm961, %v696
        %1284 = vst.msk [vmem:[#allocation2 + $0x40] sm:$0xff] %vm961, %v697
        %1285 = vst.msk [vmem:[#allocation2 + $0x48] sm:$0xff] %vm961, %v698
        %1286 = vst.msk [vmem:[#allocation2 + $0x50] sm:$0xff] %vm961, %v699
        %1287 = vst.msk [vmem:[#allocation2 + $0x58] sm:$0xff] %vm961, %v700
        %1288 = vst.msk [vmem:[#allocation2 + $0x60] sm:$0xff] %vm961, %v701
        %1289 = vst.msk [vmem:[#allocation2 + $0x68] sm:$0xff] %vm961, %v702
        %1290 = vst.msk [vmem:[#allocation2 + $0x70] sm:$0xff] %vm961, %v703
        %1291 = vst.msk [vmem:[#allocation2 + $0x78] sm:$0xff] %vm961, %v704
        %p1292 = scmp.eq.s32.totalorder %s27, 1
        // Predicated region
        $region83: #{tpu_custom_call.1} parent=73 // pred_check
          %p1293 = pneg %p1292
        $region84: #{tpu_custom_call.1} parent=73 // pred_check_branch
          %1295 = sbr.rel (%p1293) target = $region86
        $region85: #{tpu_custom_call.1} parent=73 // pred_region
          %v1296 = vld [vmem:[#allocation3] sm:$0xff]
          %v1297 = vld [vmem:[#allocation3 + $0x8] sm:$0xff]
          %v1298 = vld [vmem:[#allocation3 + $0x10] sm:$0xff]
          %v1299 = vld [vmem:[#allocation3 + $0x18] sm:$0xff]
          %v1300 = vld [vmem:[#allocation3 + $0x20] sm:$0xff]
          %v1301 = vld [vmem:[#allocation3 + $0x28] sm:$0xff]
          %v1302 = vld [vmem:[#allocation3 + $0x30] sm:$0xff]
          %v1303 = vld [vmem:[#allocation3 + $0x38] sm:$0xff]
          %v1304 = vld [vmem:[#allocation3 + $0x40] sm:$0xff]
          %v1305 = vld [vmem:[#allocation3 + $0x48] sm:$0xff]
          %v1306 = vld [vmem:[#allocation3 + $0x50] sm:$0xff]
          %v1307 = vld [vmem:[#allocation3 + $0x58] sm:$0xff]
          %v1308 = vld [vmem:[#allocation3 + $0x60] sm:$0xff]
          %v1309 = vld [vmem:[#allocation3 + $0x68] sm:$0xff]
          %v1310 = vld [vmem:[#allocation3 + $0x70] sm:$0xff]
          %v1311 = vld [vmem:[#allocation3 + $0x78] sm:$0xff]
          %v1312 = vrcp.pop %v1296
          %v1313 = vrcp.pop %v1297
          %v1314 = vrcp.pop %v1298
          %v1315 = vrcp.pop %v1299
          %v1316 = vrcp.pop %v1300
          %v1317 = vrcp.pop %v1301
          %v1318 = vrcp.pop %v1302
          %v1319 = vrcp.pop %v1303
          %v1320 = vrcp.pop %v1304
          %v1321 = vrcp.pop %v1305
          %v1322 = vrcp.pop %v1306
          %v1323 = vrcp.pop %v1307
          %v1324 = vrcp.pop %v1308
          %v1325 = vrcp.pop %v1309
          %v1326 = vrcp.pop %v1310
          %v1327 = vrcp.pop %v1311
          %v1328 = vld [vmem:[#allocation4] sm:$0xff]
          %v1329 = vld [vmem:[#allocation4 + $0x8] sm:$0xff]
          %v1330 = vld [vmem:[#allocation4 + $0x10] sm:$0xff]
          %v1331 = vld [vmem:[#allocation4 + $0x18] sm:$0xff]
          %v1332 = vld [vmem:[#allocation4 + $0x20] sm:$0xff]
          %v1333 = vld [vmem:[#allocation4 + $0x28] sm:$0xff]
          %v1334 = vld [vmem:[#allocation4 + $0x30] sm:$0xff]
          %v1335 = vld [vmem:[#allocation4 + $0x38] sm:$0xff]
          %v1336 = vld [vmem:[#allocation4 + $0x40] sm:$0xff]
          %v1337 = vld [vmem:[#allocation4 + $0x48] sm:$0xff]
          %v1338 = vld [vmem:[#allocation4 + $0x50] sm:$0xff]
          %v1339 = vld [vmem:[#allocation4 + $0x58] sm:$0xff]
          %v1340 = vld [vmem:[#allocation4 + $0x60] sm:$0xff]
          %v1341 = vld [vmem:[#allocation4 + $0x68] sm:$0xff]
          %v1342 = vld [vmem:[#allocation4 + $0x70] sm:$0xff]
          %v1343 = vld [vmem:[#allocation4 + $0x78] sm:$0xff]
          %1345 = vset.pattern.permute.xlu0 0
          %1346 = vperm.xlu0 %1345, %v1312
          %v1347 = vpop.permute.xlu0 %1346
          %1350 = vset.pattern.permute.xlu0 0
          %1351 = vperm.xlu0 %1350, %v1313
          %v1352 = vpop.permute.xlu0 %1351
          %1355 = vset.pattern.permute.xlu0 0
          %1356 = vperm.xlu0 %1355, %v1314
          %v1357 = vpop.permute.xlu0 %1356
          %1360 = vset.pattern.permute.xlu0 0
          %1361 = vperm.xlu0 %1360, %v1315
          %v1362 = vpop.permute.xlu0 %1361
          %1365 = vset.pattern.permute.xlu0 0
          %1366 = vperm.xlu0 %1365, %v1316
          %v1367 = vpop.permute.xlu0 %1366
          %1370 = vset.pattern.permute.xlu0 0
          %1371 = vperm.xlu0 %1370, %v1317
          %v1372 = vpop.permute.xlu0 %1371
          %1375 = vset.pattern.permute.xlu0 0
          %1376 = vperm.xlu0 %1375, %v1318
          %v1377 = vpop.permute.xlu0 %1376
          %1380 = vset.pattern.permute.xlu0 0
          %1381 = vperm.xlu0 %1380, %v1319
          %v1382 = vpop.permute.xlu0 %1381
          %1385 = vset.pattern.permute.xlu0 0
          %1386 = vperm.xlu0 %1385, %v1320
          %v1387 = vpop.permute.xlu0 %1386
          %1390 = vset.pattern.permute.xlu0 0
          %1391 = vperm.xlu0 %1390, %v1321
          %v1392 = vpop.permute.xlu0 %1391
          %1395 = vset.pattern.permute.xlu0 0
          %1396 = vperm.xlu0 %1395, %v1322
          %v1397 = vpop.permute.xlu0 %1396
          %1400 = vset.pattern.permute.xlu0 0
          %1401 = vperm.xlu0 %1400, %v1323
          %v1402 = vpop.permute.xlu0 %1401
          %1405 = vset.pattern.permute.xlu0 0
          %1406 = vperm.xlu0 %1405, %v1324
          %v1407 = vpop.permute.xlu0 %1406
          %1410 = vset.pattern.permute.xlu0 0
          %1411 = vperm.xlu0 %1410, %v1325
          %v1412 = vpop.permute.xlu0 %1411
          %1415 = vset.pattern.permute.xlu0 0
          %1416 = vperm.xlu0 %1415, %v1326
          %v1417 = vpop.permute.xlu0 %1416
          %1420 = vset.pattern.permute.xlu0 0
          %1421 = vperm.xlu0 %1420, %v1327
          %v1422 = vpop.permute.xlu0 %1421
          %v1424 = vmul.f32 %v1328, %v1347
          %v1425 = vmul.f32 %v1329, %v1352
          %v1426 = vmul.f32 %v1330, %v1357
          %v1427 = vmul.f32 %v1331, %v1362
          %v1428 = vmul.f32 %v1332, %v1367
          %v1429 = vmul.f32 %v1333, %v1372
          %v1430 = vmul.f32 %v1334, %v1377
          %v1431 = vmul.f32 %v1335, %v1382
          %v1432 = vmul.f32 %v1336, %v1387
          %v1433 = vmul.f32 %v1337, %v1392
          %v1434 = vmul.f32 %v1338, %v1397
          %v1435 = vmul.f32 %v1339, %v1402
          %v1436 = vmul.f32 %v1340, %v1407
          %v1437 = vmul.f32 %v1341, %v1412
          %v1438 = vmul.f32 %v1342, %v1417
          %v1439 = vmul.f32 %v1343, %v1422
          %s1440 = sld [smem:[#allocation5]]
          %1441 = vxpose.xlu0.b32.start [1/16] %v1424, 128
          %1442 = vxpose.xlu0.b32.cont [2/16] %v1425, 128
          %1443 = vxpose.xlu0.b32.cont [3/16] %v1426, 128
          %1444 = vxpose.xlu0.b32.cont [4/16] %v1427, 128
          %1445 = vxpose.xlu0.b32.cont [5/16] %v1428, 128
          %1446 = vxpose.xlu0.b32.cont [6/16] %v1429, 128
          %1447 = vxpose.xlu0.b32.cont [7/16] %v1430, 128
          %1448 = vxpose.xlu0.b32.cont [8/16] %v1431, 128
          %1449 = vxpose.xlu0.b32.cont [9/16] %v1432, 128
          %1450 = vxpose.xlu0.b32.cont [10/16] %v1433, 128
          %1451 = vxpose.xlu0.b32.cont [11/16] %v1434, 128
          %1452 = vxpose.xlu0.b32.cont [12/16] %v1435, 128
          %1453 = vxpose.xlu0.b32.cont [13/16] %v1436, 128
          %1454 = vxpose.xlu0.b32.cont [14/16] %v1437, 128
          %1455 = vxpose.xlu0.b32.cont [15/16] %v1438, 128
          %1456 = vxpose.xlu0.b32.end [16/16] %v1439, 128
          %v1457 = vpop.trf.xlu0
          %v1458 = vpop.trf.xlu0
          %v1459 = vpop.trf.xlu0
          %v1460 = vpop.trf.xlu0
          %v1461 = vpop.trf.xlu0
          %v1462 = vpop.trf.xlu0
          %v1463 = vpop.trf.xlu0
          %v1464 = vpop.trf.xlu0
          %v1465 = vpop.trf.xlu0
          %v1466 = vpop.trf.xlu0
          %v1467 = vpop.trf.xlu0
          %v1468 = vpop.trf.xlu0
          %v1469 = vpop.trf.xlu0
          %v1470 = vpop.trf.xlu0
          %v1471 = vpop.trf.xlu0
          %v1472 = vpop.trf.xlu0
          %v1473 = vstv %s1440
          %v1474 = vmul.f32 %v1473, %v1457
          %v1475 = vmul.f32 %v1473, %v1458
          %v1476 = vld [vmem:[%s310] sm:$0xff]
          %v1477 = vld [vmem:[%s310 + $0x8] sm:$0xff]
          %v1478 = vadd.f32 %v1474, %v1476
          %v1479 = vadd.f32 %v1475, %v1477
          %1480 = vst [vmem:[%s359] sm:$0xff] %v1478
          %1481 = vst [vmem:[%s359 + $0x8] sm:$0xff] %v1479
        $region86: #{tpu_custom_call.1} parent=73 // pred_fallthru
          _
        %s1482 = sand.u32 %s182, 1
        %s1483 = scalar_lea.sflag [#allocation8], %s1482
        %s1484 = sand.u32 %s182, 1
        %s1485 = smul.addr %s1484, 16
        %s1486 = scalar_lea.vmem [#allocation7], %s1485
        // Predicated region
        $region87: #{tpu_custom_call.1} parent=73 // pred_check
          %p1487 = pneg %p192
        $region88: #{tpu_custom_call.1} parent=73 // pred_check_branch
          %1489 = sbr.rel (%p1487) target = $region90
        $region89: #{tpu_custom_call.1} parent=73 // pred_region
          %s1491 = ssub.s32 256, 256
          %1492 = vsyncadd %s1483, %s1491
          %s1493 = smul.addr %s25, 4
          %s1494 = sadd.s32 %s26, %s1493
          %s1495 = smul.addr %s1494, 128
          %s1496 = scalar_lea.hbm %s5, %s1495
          %s1497 = sshll.u32 %s1486, 4
          %s1498 = int_to_ptr.vmem [resolvable:$true] %s1497
          %1503 = dma.vmem_to_hbm [thread:$0]  %s1498, 256, %s1496, %s1483, 128, 256, 8
        $region90: #{tpu_custom_call.1} parent=73 // pred_fallthru
          _
      $region74: #{tpu_custom_call.1} parent=5 // pred_fallthru
        _
      %p1504 = scmp.le.s32.totalorder 2, %s15
      // Predicated region
      $region91: #{tpu_custom_call.1} parent=5 // pred_check
        %p1505 = pneg %p1504
      $region92: #{tpu_custom_call.1} parent=5 // pred_check_branch
        %1507 = sbr.rel (%p1505) target = $region94
      $region93: #{tpu_custom_call.1} parent=5 // pred_region
        %s1508 = ssub.s32 %s15, 2
        // Predicated region
        $region95: #{tpu_custom_call.1} parent=93 // pred_check
          %p1509 = pneg %p198
        $region96: #{tpu_custom_call.1} parent=93 // pred_check_branch
          %1511 = sbr.rel (%p1509) target = $region98
        $region97: #{tpu_custom_call.1} parent=93 // pred_region
          %s1512 = sand.u32 %s183, 1
          %s1513 = scalar_lea.sflag [#allocation8], %s1512
          %s1514 = sand.u32 %s183, 1
          %s1515 = smul.addr %s1514, 16
          %s1516 = scalar_lea.vmem [#allocation7], %s1515
          %1517 = dma.done %s1513, 256
        $region98: #{tpu_custom_call.1} parent=93 // pred_fallthru
          _
      $region94: #{tpu_custom_call.1} parent=5 // pred_fallthru
        _
    $region6: #{tpu_custom_call.1} parent=1 // loop_footer
      %s19 = sadd.s32 1, %s15
    $region7: #{tpu_custom_call.1} parent=1 // loop_footer_branch
      %14 = sbr.rel target = $region3
    $region8: #{tpu_custom_call.1} parent=1 // loop_exit
      _
    %1518 = vsyncpa [#allocation8], 1
    %s1519 = scalar_lea.sflag [#allocation8], 1
    %1520 = vsyncpa %s1519, 1

</llo_original>
